<compile_context>
chip_gen: v7x
topology: tpu7x:2x2x1
jax: 0.10.0
libtpu: 0.0.40
codegen_flags: <defaults>
</compile_context>

<pallas_src>
import functools
import math

import jax
import jax.numpy as jnp
from jax.experimental import pallas as pl
from jax.experimental.pallas import tpu as pltpu


def _mha_kernel(q_ref, k_ref, v_ref, w_in_ref, b_in_ref, wo_ref, bo_ref, o_ref,
                *, heads, seq):
    # q_ref / k_ref / v_ref / o_ref : (block_b*S, E) VMEM tiles (rows = batch*seq).
    # w_in_ref : (3, E, E) bf16   b_in_ref : (3, 1, E) f32
    # wo_ref   : (E, E)    bf16   bo_ref   : (1, E)    f32
    n_rows, E = q_ref.shape
    H, S = heads, seq
    D = E // H
    Bt = n_rows // S

    # ---- fused input projections (bf16 MXU, f32 accumulate + f32 bias) ------
    def project(x_ref, i):
        x = x_ref[...].astype(jnp.bfloat16)                       # (n, E)
        return (jnp.dot(x, w_in_ref[i], preferred_element_type=jnp.float32)
                + b_in_ref[i])                                     # (n, E) f32

    Q = project(q_ref, 0)
    K = project(k_ref, 1)
    V = project(v_ref, 2)

    # Fold 1/sqrt(D) into Q (n*E elements) instead of the (Bt*H, S, S) energy.
    Q = Q * jnp.float32(1.0 / math.sqrt(D))

    # ---- head/batch split: (n, E) -> (Bt*H, S, D) ----------------------------
    # Static row/lane slices + one stack (proven lowering on this toolchain).
    # A pltpu.einshape('(bq)(hd)->(bh)qd', ...) grouped relayout would avoid
    # the Bt*H masked copies at production sizes.
    def split_heads(x):
        slabs = [x[b * S:(b + 1) * S, h * D:(h + 1) * D]
                 for b in range(Bt) for h in range(H)]
        return jnp.stack(slabs, axis=0)                            # (Bt*H, S, D)

    Qh = split_heads(Q).astype(jnp.bfloat16)
    Kh = split_heads(K).astype(jnp.bfloat16)
    Vh = split_heads(V).astype(jnp.bfloat16)

    # ---- attention: every (batch, head) pair in one batched MXU einsum ------
    # K is consumed untransposed (contracting dims handle the transpose).
    energy = jnp.einsum('nqd,nkd->nqk', Qh, Kh,
                        preferred_element_type=jnp.float32)        # (Bt*H, S, S) f32

    # Numerically-stable softmax over keys, all in f32.
    m = jnp.max(energy, axis=-1, keepdims=True)
    p = jnp.exp(energy - m)
    denom = jnp.sum(p, axis=-1, keepdims=True)
    r = pl.reciprocal(denom, approx=True)        # EUP slot (free)
    r = r * (2.0 - denom * r)                    # one Newton step -> ~f32 accuracy
    attn = (p * r).astype(jnp.bfloat16)

    ctx = jnp.einsum('nqk,nkd->nqd', attn, Vh,
                     preferred_element_type=jnp.float32)            # (Bt*H, S, D) f32

    # ---- merge heads back to rows: (Bt*H, S, D) -> (n, E) --------------------
    # Matches torch's permute(0, 2, 1, 3) + view(B, -1, H*D).
    ctx2d = jnp.concatenate(
        [jnp.concatenate([ctx[b * H + h] for h in range(H)], axis=-1)  # (S, E)
         for b in range(Bt)],
        axis=0)                                                        # (n, E)

    # ---- fused output projection (bf16 MXU, f32 accumulate), full-block store
    out = (jnp.dot(ctx2d.astype(jnp.bfloat16), wo_ref[...],
                   preferred_element_type=jnp.float32) + bo_ref[...])
    o_ref[...] = out.astype(o_ref.dtype)


def _pick_block_b(B, S, E, heads, budget_bytes=8 << 20):
    """Largest divisor of B whose per-step f32 working set fits the budget."""
    best = 1
    for bt in range(1, B + 1):
        if B % bt:
            continue
        n = bt * S
        need = 4 * (2 * 4 * n * E              # 3 in + 1 out seq blocks, x2 pipeline
                    + 8 * n * E                # Q/K/V, head slabs, ctx, out
                    + 3 * bt * heads * S * S)  # energy / probs / attn
        if need <= budget_bytes:
            best = bt
    return best


def _vmem_limit_bytes(block_b, S, E, heads):
    f32, bf16 = 4, 2
    n = block_b * S
    seq_blocks = 2 * (4 * n * E * f32)                         # double-buffered 3 in + 1 out
    weights = 2 * ((3 * E * E + E * E) * bf16 + (4 * E) * f32)  # double-buffered weights/biases
    inter = (8 * n * E) * f32 + (4 * n * E) * bf16              # single copy, not pipelined
    attn = (2 * block_b * heads * S * S) * f32 + (block_b * heads * S * S) * bf16
    total = seq_blocks + weights + inter + attn
    return int(min(max(int(1.5 * total), 4 << 20), 32 << 20))


def multi_headed_attention(query, key, value, params, *, heads, block_b=None):
    """query/key/value: [B, S, E] float32.  params: dict of projection weights."""
    B, S, E = query.shape
    assert E % heads == 0
    D = E // heads
    if block_b is None:
        block_b = _pick_block_b(B, S, E, heads)
    assert B % block_b == 0

    # Wrapper-side packing (plain XLA, free relative to the kernel):
    #   * stacked bf16 input-projection weights + f32 biases (2 DMA streams)
    #   * bf16 output-projection weight
    #   * (B, S) flattened to rows so the kernel never reshapes across the
    #     sublane/lane boundary.
    w_in = jnp.stack([params["wq"], params["wk"], params["wv"]]).astype(jnp.bfloat16)
    b_in = jnp.stack([params["bq"], params["bk"], params["bv"]])   # (3, 1, E) f32
    wo = params["wo"].astype(jnp.bfloat16)                          # (E, E)  bf16
    bo = params["bo"]                                                # (1, E)  f32

    q2 = query.reshape(B * S, E)
    k2 = key.reshape(B * S, E)
    v2 = value.reshape(B * S, E)

    n_rows = block_b * S
    seq_spec = pl.BlockSpec((n_rows, E), lambda b: (b, 0))
    w_in_spec = pl.BlockSpec((3, E, E), lambda b: (0, 0, 0))
    b_in_spec = pl.BlockSpec((3, 1, E), lambda b: (0, 0, 0))
    wo_spec = pl.BlockSpec((E, E), lambda b: (0, 0))
    bo_spec = pl.BlockSpec((1, E), lambda b: (0, 0))
    # NOTE: weight index_maps are constant across the grid; at production E
    # single-buffer them with pipeline_mode=pl.Buffered(1).

    itemsize = 4
    cost = pl.CostEstimate(
        flops=B * (4 * 2 * S * E * E + 2 * 2 * heads * S * S * D),
        transcendentals=B * heads * S * S,
        bytes_accessed=(4 * B * S * E * itemsize         # 3 inputs + 1 output, f32
                        + 4 * E * E * 2 + 4 * E * 4),    # bf16 weights + f32 biases
    )

    kernel = functools.partial(_mha_kernel, heads=heads, seq=S)

    out2 = pl.pallas_call(
        kernel,
        out_shape=jax.ShapeDtypeStruct((B * S, E), query.dtype),
        grid_spec=pltpu.PrefetchScalarGridSpec(
            num_scalar_prefetch=0,
            grid=(B // block_b,),
            in_specs=[seq_spec, seq_spec, seq_spec,
                      w_in_spec, b_in_spec, wo_spec, bo_spec],
            out_specs=seq_spec,
        ),
        compiler_params=pltpu.CompilerParams(
            dimension_semantics=("parallel",),
            vmem_limit_bytes=_vmem_limit_bytes(block_b, S, E, heads),
        ),
        cost_estimate=cost,
    )(q2, k2, v2, w_in, b_in, wo, bo)

    return out2.reshape(B, S, E)


def _reference(query, key, value, params, *, heads):
    """Pure-JAX f32 reference mirroring the PyTorch forward (eval mode, mask=None)."""
    B, S, E = query.shape
    D = E // heads
    Q = query @ params["wq"] + params["bq"][0]
    K = key @ params["wk"] + params["bk"][0]
    V = value @ params["wv"] + params["bv"][0]
    Q = Q.reshape(B, S, heads, D).transpose(0, 2, 1, 3)
    K = K.reshape(B, S, heads, D).transpose(0, 2, 1, 3)
    V = V.reshape(B, S, heads, D).transpose(0, 2, 1, 3)
    energy = jnp.einsum("bhqd,bhkd->bhqk", Q, K) / jnp.sqrt(jnp.float32(D))
    attn = jax.nn.softmax(energy, axis=-1)
    x = jnp.einsum("bhqk,bhkd->bhqd", attn, V)
    x = x.transpose(0, 2, 1, 3).reshape(B, S, E)
    return x @ params["wo"] + params["bo"][0]


if __name__ == "__main__":
    B, S, E, H = 2, 8, 32, 4  # embed_dim=32, heads=4 -> attn_dim=8

    key0 = jax.random.PRNGKey(0)
    keys = jax.random.split(key0, 12)

    def lin_init(kw, kb, fan_in, fan_out):
        # mimic nn.Linear default init (uniform +/- 1/sqrt(fan_in)); stored [in, out]
        bound = 1.0 / math.sqrt(fan_in)
        w = jax.random.uniform(kw, (fan_in, fan_out), jnp.float32, -bound, bound)
        b = jax.random.uniform(kb, (1, fan_out), jnp.float32, -bound, bound)
        return w, b

    wq, bq = lin_init(keys[0], keys[1], E, E)
    wk, bk = lin_init(keys[2], keys[3], E, E)
    wv, bv = lin_init(keys[4], keys[5], E, E)
    wo, bo = lin_init(keys[6], keys[7], E, E)
    params = dict(wq=wq, bq=bq, wk=wk, bk=bk, wv=wv, bv=bv, wo=wo, bo=bo)

    query = jax.random.normal(keys[8], (B, S, E), jnp.float32)
    key_ = jax.random.normal(keys[9], (B, S, E), jnp.float32)
    value = jax.random.normal(keys[10], (B, S, E), jnp.float32)

    out = multi_headed_attention(query, key_, value, params, heads=H)
    out = jax.block_until_ready(out)

    ref = _reference(query, key_, value, params, heads=H)
    assert out.shape == (B, S, E)
    # Tolerance reflects bf16 weights/activations at the MXU (per perf review);
    # the softmax path and all accumulation remain f32 (Newton-refined recip).
    assert jnp.allclose(out, ref, atol=2e-2, rtol=2e-2), float(
        jnp.max(jnp.abs(out - ref)))

    print("KERNEL_OK")
</pallas_src>

<mosaic_0001>
module attributes {stable_mosaic.version = 11 : i64} {
  func.func @_mha_kernel(%arg0: i32, %arg1: memref<16x32xf32, #tpu.memory_space<vmem>>, %arg2: memref<16x32xf32, #tpu.memory_space<vmem>>, %arg3: memref<16x32xf32, #tpu.memory_space<vmem>>, %arg4: memref<3x32x32xbf16, #tpu.memory_space<vmem>>, %arg5: memref<3x1x32xf32, #tpu.memory_space<vmem>>, %arg6: memref<32x32xbf16, #tpu.memory_space<vmem>>, %arg7: memref<1x32xf32, #tpu.memory_space<vmem>>, %arg8: memref<16x32xf32, #tpu.memory_space<vmem>>) attributes {dimension_semantics = [#tpu.dimension_semantics<parallel>], iteration_bounds = array<i64: 1>, scalar_prefetch = 0 : i64, scratch_operands = 0 : i64, tpu.core_type = #tpu.core_type<tc>, window_params = [{transform_indices = @transform_0, window_bounds = array<i64: 16, 32>}, {transform_indices = @transform_1, window_bounds = array<i64: 16, 32>}, {transform_indices = @transform_2, window_bounds = array<i64: 16, 32>}, {pipeline_mode = #tpu.pipeline_mode<synchronous>, transform_indices = @transform_3, window_bounds = array<i64: 3, 32, 32>}, {pipeline_mode = #tpu.pipeline_mode<synchronous>, transform_indices = @transform_4, window_bounds = array<i64: 3, 1, 32>}, {pipeline_mode = #tpu.pipeline_mode<synchronous>, transform_indices = @transform_5, window_bounds = array<i64: 32, 32>}, {pipeline_mode = #tpu.pipeline_mode<synchronous>, transform_indices = @transform_6, window_bounds = array<i64: 1, 32>}, {transform_indices = @transform_7, window_bounds = array<i64: 16, 32>}]} {
    %c0 = arith.constant 0 : index
    %c0_0 = arith.constant 0 : index
    %0 = vector.load %arg1[%c0, %c0_0] : memref<16x32xf32, #tpu.memory_space<vmem>>, vector<16x32xf32>
    %1 = arith.truncf %0 : vector<16x32xf32> to vector<16x32xbf16>
    %c0_1 = arith.constant 0 : index
    %c0_2 = arith.constant 0 : index
    %c0_3 = arith.constant 0 : index
    %2 = vector.load %arg4[%c0_1, %c0_2, %c0_3] : memref<3x32x32xbf16, #tpu.memory_space<vmem>>, vector<1x32x32xbf16>
    %3 = vector.shape_cast %2 : vector<1x32x32xbf16> to vector<32x32xbf16>
    %cst = arith.constant dense<0.000000e+00> : vector<16x32xf32>
    %4 = tpu.matmul %1, %3, %cst {dimension_numbers = #tpu.dot_dimension_numbers<[1], [0], [0], [1], [0, 0, 1, 1], [], []>} : vector<16x32xbf16>, vector<32x32xbf16>, vector<16x32xf32> -> vector<16x32xf32>
    %c0_4 = arith.constant 0 : index
    %c0_5 = arith.constant 0 : index
    %c0_6 = arith.constant 0 : index
    %5 = vector.load %arg5[%c0_4, %c0_5, %c0_6] : memref<3x1x32xf32, #tpu.memory_space<vmem>>, vector<1x1x32xf32>
    %6 = vector.shape_cast %5 : vector<1x1x32xf32> to vector<1x32xf32>
    %7 = vector.broadcast %6 : vector<1x32xf32> to vector<16x32xf32>
    %8 = arith.addf %4, %7 : vector<16x32xf32>
    %c0_7 = arith.constant 0 : index
    %c0_8 = arith.constant 0 : index
    %9 = vector.load %arg2[%c0_7, %c0_8] : memref<16x32xf32, #tpu.memory_space<vmem>>, vector<16x32xf32>
    %10 = arith.truncf %9 : vector<16x32xf32> to vector<16x32xbf16>
    %c1 = arith.constant 1 : index
    %c0_9 = arith.constant 0 : index
    %c0_10 = arith.constant 0 : index
    %11 = vector.load %arg4[%c1, %c0_9, %c0_10] : memref<3x32x32xbf16, #tpu.memory_space<vmem>>, vector<1x32x32xbf16>
    %12 = vector.shape_cast %11 : vector<1x32x32xbf16> to vector<32x32xbf16>
    %cst_11 = arith.constant dense<0.000000e+00> : vector<16x32xf32>
    %13 = tpu.matmul %10, %12, %cst_11 {dimension_numbers = #tpu.dot_dimension_numbers<[1], [0], [0], [1], [0, 0, 1, 1], [], []>} : vector<16x32xbf16>, vector<32x32xbf16>, vector<16x32xf32> -> vector<16x32xf32>
    %c1_12 = arith.constant 1 : index
    %c0_13 = arith.constant 0 : index
    %c0_14 = arith.constant 0 : index
    %14 = vector.load %arg5[%c1_12, %c0_13, %c0_14] : memref<3x1x32xf32, #tpu.memory_space<vmem>>, vector<1x1x32xf32>
    %15 = vector.shape_cast %14 : vector<1x1x32xf32> to vector<1x32xf32>
    %16 = vector.broadcast %15 : vector<1x32xf32> to vector<16x32xf32>
    %17 = arith.addf %13, %16 : vector<16x32xf32>
    %c0_15 = arith.constant 0 : index
    %c0_16 = arith.constant 0 : index
    %18 = vector.load %arg3[%c0_15, %c0_16] : memref<16x32xf32, #tpu.memory_space<vmem>>, vector<16x32xf32>
    %19 = arith.truncf %18 : vector<16x32xf32> to vector<16x32xbf16>
    %c2 = arith.constant 2 : index
    %c0_17 = arith.constant 0 : index
    %c0_18 = arith.constant 0 : index
    %20 = vector.load %arg4[%c2, %c0_17, %c0_18] : memref<3x32x32xbf16, #tpu.memory_space<vmem>>, vector<1x32x32xbf16>
    %21 = vector.shape_cast %20 : vector<1x32x32xbf16> to vector<32x32xbf16>
    %cst_19 = arith.constant dense<0.000000e+00> : vector<16x32xf32>
    %22 = tpu.matmul %19, %21, %cst_19 {dimension_numbers = #tpu.dot_dimension_numbers<[1], [0], [0], [1], [0, 0, 1, 1], [], []>} : vector<16x32xbf16>, vector<32x32xbf16>, vector<16x32xf32> -> vector<16x32xf32>
    %c2_20 = arith.constant 2 : index
    %c0_21 = arith.constant 0 : index
    %c0_22 = arith.constant 0 : index
    %23 = vector.load %arg5[%c2_20, %c0_21, %c0_22] : memref<3x1x32xf32, #tpu.memory_space<vmem>>, vector<1x1x32xf32>
    %24 = vector.shape_cast %23 : vector<1x1x32xf32> to vector<1x32xf32>
    %25 = vector.broadcast %24 : vector<1x32xf32> to vector<16x32xf32>
    %26 = arith.addf %22, %25 : vector<16x32xf32>
    %cst_23 = arith.constant 0.353553385 : f32
    %27 = vector.broadcast %cst_23 : f32 to vector<16x32xf32>
    %28 = arith.mulf %8, %27 : vector<16x32xf32>
    %29 = vector.extract_strided_slice %28 {offsets = [0, 0], sizes = [8, 8], strides = [1, 1]} : vector<16x32xf32> to vector<8x8xf32>
    %30 = vector.extract_strided_slice %28 {offsets = [0, 8], sizes = [8, 8], strides = [1, 1]} : vector<16x32xf32> to vector<8x8xf32>
    %31 = vector.extract_strided_slice %28 {offsets = [0, 16], sizes = [8, 8], strides = [1, 1]} : vector<16x32xf32> to vector<8x8xf32>
    %32 = vector.extract_strided_slice %28 {offsets = [0, 24], sizes = [8, 8], strides = [1, 1]} : vector<16x32xf32> to vector<8x8xf32>
    %33 = vector.extract_strided_slice %28 {offsets = [8, 0], sizes = [8, 8], strides = [1, 1]} : vector<16x32xf32> to vector<8x8xf32>
    %34 = vector.extract_strided_slice %28 {offsets = [8, 8], sizes = [8, 8], strides = [1, 1]} : vector<16x32xf32> to vector<8x8xf32>
    %35 = vector.extract_strided_slice %28 {offsets = [8, 16], sizes = [8, 8], strides = [1, 1]} : vector<16x32xf32> to vector<8x8xf32>
    %36 = vector.extract_strided_slice %28 {offsets = [8, 24], sizes = [8, 8], strides = [1, 1]} : vector<16x32xf32> to vector<8x8xf32>
    %37 = vector.shape_cast %29 : vector<8x8xf32> to vector<1x8x8xf32>
    %38 = vector.shape_cast %30 : vector<8x8xf32> to vector<1x8x8xf32>
    %39 = vector.shape_cast %31 : vector<8x8xf32> to vector<1x8x8xf32>
    %40 = vector.shape_cast %32 : vector<8x8xf32> to vector<1x8x8xf32>
    %41 = vector.shape_cast %33 : vector<8x8xf32> to vector<1x8x8xf32>
    %42 = vector.shape_cast %34 : vector<8x8xf32> to vector<1x8x8xf32>
    %43 = vector.shape_cast %35 : vector<8x8xf32> to vector<1x8x8xf32>
    %44 = vector.shape_cast %36 : vector<8x8xf32> to vector<1x8x8xf32>
    %45 = tpu.concatenate %37, %38, %39, %40, %41, %42, %43, %44 in 0 : vector<1x8x8xf32>, vector<1x8x8xf32>, vector<1x8x8xf32>, vector<1x8x8xf32>, vector<1x8x8xf32>, vector<1x8x8xf32>, vector<1x8x8xf32>, vector<1x8x8xf32> -> vector<8x8x8xf32>
    %46 = arith.truncf %45 : vector<8x8x8xf32> to vector<8x8x8xbf16>
    %47 = vector.extract_strided_slice %17 {offsets = [0, 0], sizes = [8, 8], strides = [1, 1]} : vector<16x32xf32> to vector<8x8xf32>
    %48 = vector.extract_strided_slice %17 {offsets = [0, 8], sizes = [8, 8], strides = [1, 1]} : vector<16x32xf32> to vector<8x8xf32>
    %49 = vector.extract_strided_slice %17 {offsets = [0, 16], sizes = [8, 8], strides = [1, 1]} : vector<16x32xf32> to vector<8x8xf32>
    %50 = vector.extract_strided_slice %17 {offsets = [0, 24], sizes = [8, 8], strides = [1, 1]} : vector<16x32xf32> to vector<8x8xf32>
    %51 = vector.extract_strided_slice %17 {offsets = [8, 0], sizes = [8, 8], strides = [1, 1]} : vector<16x32xf32> to vector<8x8xf32>
    %52 = vector.extract_strided_slice %17 {offsets = [8, 8], sizes = [8, 8], strides = [1, 1]} : vector<16x32xf32> to vector<8x8xf32>
    %53 = vector.extract_strided_slice %17 {offsets = [8, 16], sizes = [8, 8], strides = [1, 1]} : vector<16x32xf32> to vector<8x8xf32>
    %54 = vector.extract_strided_slice %17 {offsets = [8, 24], sizes = [8, 8], strides = [1, 1]} : vector<16x32xf32> to vector<8x8xf32>
    %55 = vector.shape_cast %47 : vector<8x8xf32> to vector<1x8x8xf32>
    %56 = vector.shape_cast %48 : vector<8x8xf32> to vector<1x8x8xf32>
    %57 = vector.shape_cast %49 : vector<8x8xf32> to vector<1x8x8xf32>
    %58 = vector.shape_cast %50 : vector<8x8xf32> to vector<1x8x8xf32>
    %59 = vector.shape_cast %51 : vector<8x8xf32> to vector<1x8x8xf32>
    %60 = vector.shape_cast %52 : vector<8x8xf32> to vector<1x8x8xf32>
    %61 = vector.shape_cast %53 : vector<8x8xf32> to vector<1x8x8xf32>
    %62 = vector.shape_cast %54 : vector<8x8xf32> to vector<1x8x8xf32>
    %63 = tpu.concatenate %55, %56, %57, %58, %59, %60, %61, %62 in 0 : vector<1x8x8xf32>, vector<1x8x8xf32>, vector<1x8x8xf32>, vector<1x8x8xf32>, vector<1x8x8xf32>, vector<1x8x8xf32>, vector<1x8x8xf32>, vector<1x8x8xf32> -> vector<8x8x8xf32>
    %64 = arith.truncf %63 : vector<8x8x8xf32> to vector<8x8x8xbf16>
    %65 = vector.extract_strided_slice %26 {offsets = [0, 0], sizes = [8, 8], strides = [1, 1]} : vector<16x32xf32> to vector<8x8xf32>
    %66 = vector.extract_strided_slice %26 {offsets = [0, 8], sizes = [8, 8], strides = [1, 1]} : vector<16x32xf32> to vector<8x8xf32>
    %67 = vector.extract_strided_slice %26 {offsets = [0, 16], sizes = [8, 8], strides = [1, 1]} : vector<16x32xf32> to vector<8x8xf32>
    %68 = vector.extract_strided_slice %26 {offsets = [0, 24], sizes = [8, 8], strides = [1, 1]} : vector<16x32xf32> to vector<8x8xf32>
    %69 = vector.extract_strided_slice %26 {offsets = [8, 0], sizes = [8, 8], strides = [1, 1]} : vector<16x32xf32> to vector<8x8xf32>
    %70 = vector.extract_strided_slice %26 {offsets = [8, 8], sizes = [8, 8], strides = [1, 1]} : vector<16x32xf32> to vector<8x8xf32>
    %71 = vector.extract_strided_slice %26 {offsets = [8, 16], sizes = [8, 8], strides = [1, 1]} : vector<16x32xf32> to vector<8x8xf32>
    %72 = vector.extract_strided_slice %26 {offsets = [8, 24], sizes = [8, 8], strides = [1, 1]} : vector<16x32xf32> to vector<8x8xf32>
    %73 = vector.shape_cast %65 : vector<8x8xf32> to vector<1x8x8xf32>
    %74 = vector.shape_cast %66 : vector<8x8xf32> to vector<1x8x8xf32>
    %75 = vector.shape_cast %67 : vector<8x8xf32> to vector<1x8x8xf32>
    %76 = vector.shape_cast %68 : vector<8x8xf32> to vector<1x8x8xf32>
    %77 = vector.shape_cast %69 : vector<8x8xf32> to vector<1x8x8xf32>
    %78 = vector.shape_cast %70 : vector<8x8xf32> to vector<1x8x8xf32>
    %79 = vector.shape_cast %71 : vector<8x8xf32> to vector<1x8x8xf32>
    %80 = vector.shape_cast %72 : vector<8x8xf32> to vector<1x8x8xf32>
    %81 = tpu.concatenate %73, %74, %75, %76, %77, %78, %79, %80 in 0 : vector<1x8x8xf32>, vector<1x8x8xf32>, vector<1x8x8xf32>, vector<1x8x8xf32>, vector<1x8x8xf32>, vector<1x8x8xf32>, vector<1x8x8xf32>, vector<1x8x8xf32> -> vector<8x8x8xf32>
    %82 = arith.truncf %81 : vector<8x8x8xf32> to vector<8x8x8xbf16>
    "tpu.trace_start"() <{level = 10 : i32, message = "nqd,nkd->nqk"}> : () -> ()
    %cst_24 = arith.constant dense<0.000000e+00> : vector<8x8x8xf32>
    %83 = tpu.matmul %46, %64, %cst_24 {dimension_numbers = #tpu.dot_dimension_numbers<[2], [2], [1], [1], [0, 0, 0, 1, 1, 1], [0], [0]>} : vector<8x8x8xbf16>, vector<8x8x8xbf16>, vector<8x8x8xf32> -> vector<8x8x8xf32>
    "tpu.trace_stop"() : () -> ()
    %cst_25 = arith.constant dense<0xFF800000> : vector<8x8xf32>
    %84 = vector.multi_reduction <maximumf>, %83, %cst_25 [2] : vector<8x8x8xf32> to vector<8x8xf32>
    %85 = vector.shape_cast %84 : vector<8x8xf32> to vector<8x8x1xf32>
    %86 = vector.broadcast %85 : vector<8x8x1xf32> to vector<8x8x8xf32>
    %87 = arith.subf %83, %86 : vector<8x8x8xf32>
    %88 = math.exp %87 : vector<8x8x8xf32>
    %cst_26 = arith.constant dense<0.000000e+00> : vector<8x8xf32>
    %89 = vector.multi_reduction <add>, %88, %cst_26 [2] : vector<8x8x8xf32> to vector<8x8xf32>
    %90 = vector.shape_cast %89 : vector<8x8xf32> to vector<8x8x1xf32>
    %91 = tpu.reciprocal %90 {approx = true} : vector<8x8x1xf32> -> vector<8x8x1xf32>
    %92 = arith.mulf %90, %91 : vector<8x8x1xf32>
    %cst_27 = arith.constant 2.000000e+00 : f32
    %93 = vector.broadcast %cst_27 : f32 to vector<8x8x1xf32>
    %94 = arith.subf %93, %92 : vector<8x8x1xf32>
    %95 = arith.mulf %91, %94 : vector<8x8x1xf32>
    %96 = vector.broadcast %95 : vector<8x8x1xf32> to vector<8x8x8xf32>
    %97 = arith.mulf %88, %96 : vector<8x8x8xf32>
    %98 = arith.truncf %97 : vector<8x8x8xf32> to vector<8x8x8xbf16>
    "tpu.trace_start"() <{level = 10 : i32, message = "nqk,nkd->nqd"}> : () -> ()
    %cst_28 = arith.constant dense<0.000000e+00> : vector<8x8x8xf32>
    %99 = tpu.matmul %98, %82, %cst_28 {dimension_numbers = #tpu.dot_dimension_numbers<[2], [1], [1], [2], [0, 0, 0, 1, 1, 2], [0], [0]>} : vector<8x8x8xbf16>, vector<8x8x8xbf16>, vector<8x8x8xf32> -> vector<8x8x8xf32>
    "tpu.trace_stop"() : () -> ()
    %100 = vector.extract_strided_slice %99 {offsets = [0, 0, 0], sizes = [1, 8, 8], strides = [1, 1, 1]} : vector<8x8x8xf32> to vector<1x8x8xf32>
    %101 = vector.shape_cast %100 : vector<1x8x8xf32> to vector<8x8xf32>
    %102 = vector.extract_strided_slice %99 {offsets = [1, 0, 0], sizes = [1, 8, 8], strides = [1, 1, 1]} : vector<8x8x8xf32> to vector<1x8x8xf32>
    %103 = vector.shape_cast %102 : vector<1x8x8xf32> to vector<8x8xf32>
    %104 = vector.extract_strided_slice %99 {offsets = [2, 0, 0], sizes = [1, 8, 8], strides = [1, 1, 1]} : vector<8x8x8xf32> to vector<1x8x8xf32>
    %105 = vector.shape_cast %104 : vector<1x8x8xf32> to vector<8x8xf32>
    %106 = vector.extract_strided_slice %99 {offsets = [3, 0, 0], sizes = [1, 8, 8], strides = [1, 1, 1]} : vector<8x8x8xf32> to vector<1x8x8xf32>
    %107 = vector.shape_cast %106 : vector<1x8x8xf32> to vector<8x8xf32>
    %108 = tpu.concatenate %101, %103, %105, %107 in 1 : vector<8x8xf32>, vector<8x8xf32>, vector<8x8xf32>, vector<8x8xf32> -> vector<8x32xf32>
    %109 = vector.extract_strided_slice %99 {offsets = [4, 0, 0], sizes = [1, 8, 8], strides = [1, 1, 1]} : vector<8x8x8xf32> to vector<1x8x8xf32>
    %110 = vector.shape_cast %109 : vector<1x8x8xf32> to vector<8x8xf32>
    %111 = vector.extract_strided_slice %99 {offsets = [5, 0, 0], sizes = [1, 8, 8], strides = [1, 1, 1]} : vector<8x8x8xf32> to vector<1x8x8xf32>
    %112 = vector.shape_cast %111 : vector<1x8x8xf32> to vector<8x8xf32>
    %113 = vector.extract_strided_slice %99 {offsets = [6, 0, 0], sizes = [1, 8, 8], strides = [1, 1, 1]} : vector<8x8x8xf32> to vector<1x8x8xf32>
    %114 = vector.shape_cast %113 : vector<1x8x8xf32> to vector<8x8xf32>
    %115 = vector.extract_strided_slice %99 {offsets = [7, 0, 0], sizes = [1, 8, 8], strides = [1, 1, 1]} : vector<8x8x8xf32> to vector<1x8x8xf32>
    %116 = vector.shape_cast %115 : vector<1x8x8xf32> to vector<8x8xf32>
    %117 = tpu.concatenate %110, %112, %114, %116 in 1 : vector<8x8xf32>, vector<8x8xf32>, vector<8x8xf32>, vector<8x8xf32> -> vector<8x32xf32>
    %118 = tpu.concatenate %108, %117 in 0 : vector<8x32xf32>, vector<8x32xf32> -> vector<16x32xf32>
    %119 = arith.truncf %118 : vector<16x32xf32> to vector<16x32xbf16>
    %c0_29 = arith.constant 0 : index
    %c0_30 = arith.constant 0 : index
    %120 = vector.load %arg6[%c0_29, %c0_30] : memref<32x32xbf16, #tpu.memory_space<vmem>>, vector<32x32xbf16>
    %cst_31 = arith.constant dense<0.000000e+00> : vector<16x32xf32>
    %121 = tpu.matmul %119, %120, %cst_31 {dimension_numbers = #tpu.dot_dimension_numbers<[1], [0], [0], [1], [0, 0, 1, 1], [], []>} : vector<16x32xbf16>, vector<32x32xbf16>, vector<16x32xf32> -> vector<16x32xf32>
    %c0_32 = arith.constant 0 : index
    %c0_33 = arith.constant 0 : index
    %122 = vector.load %arg7[%c0_32, %c0_33] : memref<1x32xf32, #tpu.memory_space<vmem>>, vector<1x32xf32>
    %123 = vector.broadcast %122 : vector<1x32xf32> to vector<16x32xf32>
    %124 = arith.addf %121, %123 : vector<16x32xf32>
    %c0_34 = arith.constant 0 : index
    %c0_35 = arith.constant 0 : index
    %125 = vector.load %arg8[%c0_34, %c0_35] : memref<16x32xf32, #tpu.memory_space<vmem>>, vector<16x32xf32>
    tpu.vector_store %arg8[%c0_34, %c0_35], %124 {strides = array<i32>} : memref<16x32xf32, #tpu.memory_space<vmem>>, vector<16x32xf32>,
    return
  }
  func.func @transform_0(%arg0: i32) -> (i32, i32) {
    %c0_i32 = arith.constant 0 : i32
    %c0_i32_0 = arith.constant 0 : i32
    return %arg0, %c0_i32 : i32, i32
  }
  func.func @transform_1(%arg0: i32) -> (i32, i32) {
    %c0_i32 = arith.constant 0 : i32
    %c0_i32_0 = arith.constant 0 : i32
    return %arg0, %c0_i32 : i32, i32
  }
  func.func @transform_2(%arg0: i32) -> (i32, i32) {
    %c0_i32 = arith.constant 0 : i32
    %c0_i32_0 = arith.constant 0 : i32
    return %arg0, %c0_i32 : i32, i32
  }
  func.func @transform_3(%arg0: i32) -> (i32, i32, i32) {
    %c0_i32 = arith.constant 0 : i32
    %c0_i32_0 = arith.constant 0 : i32
    %c0_i32_1 = arith.constant 0 : i32
    %c0_i32_2 = arith.constant 0 : i32
    return %c0_i32, %c0_i32_0, %c0_i32_1 : i32, i32, i32
  }
  func.func @transform_4(%arg0: i32) -> (i32, i32, i32) {
    %c0_i32 = arith.constant 0 : i32
    %c0_i32_0 = arith.constant 0 : i32
    %c0_i32_1 = arith.constant 0 : i32
    %c0_i32_2 = arith.constant 0 : i32
    return %c0_i32, %c0_i32_0, %c0_i32_1 : i32, i32, i32
  }
  func.func @transform_5(%arg0: i32) -> (i32, i32) {
    %c0_i32 = arith.constant 0 : i32
    %c0_i32_0 = arith.constant 0 : i32
    %c0_i32_1 = arith.constant 0 : i32
    return %c0_i32, %c0_i32_0 : i32, i32
  }
  func.func @transform_6(%arg0: i32) -> (i32, i32) {
    %c0_i32 = arith.constant 0 : i32
    %c0_i32_0 = arith.constant 0 : i32
    %c0_i32_1 = arith.constant 0 : i32
    return %c0_i32, %c0_i32_0 : i32, i32
  }
  func.func @transform_7(%arg0: i32) -> (i32, i32) {
    %c0_i32 = arith.constant 0 : i32
    %c0_i32_0 = arith.constant 0 : i32
    return %arg0, %c0_i32 : i32, i32
  }
}

</mosaic_0001>

<llo_original>
// kernel: tpu_custom_call.1
$region0: #{tpu_custom_call.1}
  #allocation0 [shape = 'u32[]', space=smem, size = 0x4, offset = 0x4, fixed_abs, tag = 'smem constant byte address 0x4 - core index']
  #allocation1 [shape = 'u32[144,128]{1,0:T(1,128)}', space=vmem, size = 0x12000, scoped, tag = 'internal scratch']
  %s0 = inlined_call_operand.hbm [shape: f32[16,32], index: 0, kind: input, shape index: {}]
  %s1 = inlined_call_operand.hbm [shape: f32[16,32], index: 1, kind: input, shape index: {}]
  %s2 = inlined_call_operand.hbm [shape: f32[16,32], index: 2, kind: input, shape index: {}]
  %s3 = inlined_call_operand.hbm [shape: bf16[3,32,32], index: 3, kind: input, shape index: {}]
  %s4 = inlined_call_operand.hbm [shape: f32[3,1,32], index: 4, kind: input, shape index: {}]
  %s5 = inlined_call_operand.vmem [shape: bf16[32,32], index: 5, kind: input, shape index: {}]
  %s6 = inlined_call_operand.vmem [shape: f32[1,32], index: 6, kind: input, shape index: {}]
  %s7 = inlined_call_operand.hbm [shape: f32[16,32], index: 7, kind: output, shape index: {}]
  %s8 = sld [smem:[#allocation0]]
  $region58: #{tpu_custom_call.1} parent=0
    _
  %s10 = ssub.s32 1, %s8
  %s11 = scalar_select 0, %s10, %s8
  $region1: #{tpu_custom_call.1} parent=0
    #allocation2 [shape = 'u8[8192]{0}', space=vmem, size = 0x2000, scoped, tag = 'input window, operand 0, single buffered']
    #allocation3 [shape = 's32[1]{0}', space=sflag, size = 0x4, scoped, tag = 'scoped memory for tpu_custom_call.1']
    #allocation4 [shape = 's32[1]{0}', space=sflag, size = 0x4, scoped, tag = 'scoped memory for tpu_custom_call.1']
    #allocation5 [shape = 'u8[8192]{0}', space=vmem, size = 0x2000, scoped, tag = 'input window, operand 1, single buffered']
    #allocation6 [shape = 's32[1]{0}', space=sflag, size = 0x4, scoped, tag = 'scoped memory for tpu_custom_call.1']
    #allocation7 [shape = 'u8[8192]{0}', space=vmem, size = 0x2000, scoped, tag = 'input window, operand 2, single buffered']
    #allocation8 [shape = 'u8[24576]{0}', space=vmem, size = 0x6000, scoped, tag = 'input window, operand 3, single buffered']
    #allocation9 [shape = 's32[1]{0}', space=sflag, size = 0x4, scoped, tag = 'scoped memory for tpu_custom_call.1']
    #allocation10 [shape = 'u8[1536]{0}', space=vmem, size = 0x800, scoped, tag = 'input window, operand 4, single buffered']
    #allocation11 [shape = 'u8[8192]{0}', space=vmem, size = 0x2000, scoped, tag = 'output window, operand 0, single buffered']
    %12 = vsyncpa [#allocation3], 0
    %13 = vsyncpa [#allocation6], 0
    %14 = vsyncpa [#allocation9], 0
    %15 = vsyncpa [#allocation4], 0
    // Predicated region
    $region2: #{tpu_custom_call.1} parent=1 // pred_check
      _
    $region3: #{tpu_custom_call.1} parent=1 // pred_check_branch
      %17 = sbr.rel (0) target = $region5
    $region4: #{tpu_custom_call.1} parent=1 // pred_region
      %s19 = ssub.s32 256, 256
      %20 = vsyncadd [#allocation3], %s19
      %s21 = sshll.u32 [#allocation2], 4
      %s22 = int_to_ptr.vmem [resolvable:$true] %s21
      %27 = dma.hbm_to_vmem [thread:$0]  %s0, 256, %s22, [#allocation3], 128, 128, 8
    $region5: #{tpu_custom_call.1} parent=1 // pred_fallthru
      _
    // Predicated region
    $region6: #{tpu_custom_call.1} parent=1 // pred_check
      _
    $region7: #{tpu_custom_call.1} parent=1 // pred_check_branch
      %29 = sbr.rel (0) target = $region9
    $region8: #{tpu_custom_call.1} parent=1 // pred_region
      %s31 = ssub.s32 256, 256
      %32 = vsyncadd [#allocation6], %s31
      %s33 = sshll.u32 [#allocation5], 4
      %s34 = int_to_ptr.vmem [resolvable:$true] %s33
      %39 = dma.hbm_to_vmem [thread:$0]  %s1, 256, %s34, [#allocation6], 128, 128, 8
    $region9: #{tpu_custom_call.1} parent=1 // pred_fallthru
      _
    // Predicated region
    $region10: #{tpu_custom_call.1} parent=1 // pred_check
      _
    $region11: #{tpu_custom_call.1} parent=1 // pred_check_branch
      %41 = sbr.rel (0) target = $region13
    $region12: #{tpu_custom_call.1} parent=1 // pred_region
      %s43 = ssub.s32 256, 256
      %44 = vsyncadd [#allocation6], %s43
      %s45 = sshll.u32 [#allocation7], 4
      %s46 = int_to_ptr.vmem [resolvable:$true] %s45
      %51 = dma.hbm_to_vmem [thread:$0]  %s2, 256, %s46, [#allocation6], 128, 128, 8
    $region13: #{tpu_custom_call.1} parent=1 // pred_fallthru
      _
    // Predicated region
    $region14: #{tpu_custom_call.1} parent=1 // pred_check
      _
    $region15: #{tpu_custom_call.1} parent=1 // pred_check_branch
      %53 = sbr.rel (0) target = $region17
    $region16: #{tpu_custom_call.1} parent=1 // pred_region
      %s55 = ssub.s32 768, 768
      %56 = vsyncadd [#allocation9], %s55
      %s57 = sshll.u32 [#allocation8], 4
      %s58 = int_to_ptr.vmem [resolvable:$true] %s57
      %63 = dma.hbm_to_vmem [thread:$0]  %s3, 768, %s58, [#allocation9], 64, 64, 4
    $region17: #{tpu_custom_call.1} parent=1 // pred_fallthru
      _
    // Predicated region
    $region18: #{tpu_custom_call.1} parent=1 // pred_check
      _
    $region19: #{tpu_custom_call.1} parent=1 // pred_check_branch
      %65 = sbr.rel (0) target = $region21
    $region20: #{tpu_custom_call.1} parent=1 // pred_region
      %s67 = ssub.s32 48, 48
      %68 = vsyncadd [#allocation9], %s67
      %s69 = sshll.u32 [#allocation10], 4
      %s70 = int_to_ptr.vmem [resolvable:$true] %s69
      %75 = dma.hbm_to_vmem [thread:$0]  %s4, 48, %s70, [#allocation9], 16, 16, 1
    $region21: #{tpu_custom_call.1} parent=1 // pred_fallthru
      _
    // Predicated region
    $region22: #{tpu_custom_call.1} parent=1 // pred_check
      _
    $region23: #{tpu_custom_call.1} parent=1 // pred_check_branch
      %77 = sbr.rel (0) target = $region25
    $region24: #{tpu_custom_call.1} parent=1 // pred_region
      _
    $region25: #{tpu_custom_call.1} parent=1 // pred_fallthru
      _
    // Predicated region
    $region26: #{tpu_custom_call.1} parent=1 // pred_check
      _
    $region27: #{tpu_custom_call.1} parent=1 // pred_check_branch
      %79 = sbr.rel (0) target = $region29
    $region28: #{tpu_custom_call.1} parent=1 // pred_region
      _
    $region29: #{tpu_custom_call.1} parent=1 // pred_fallthru
      _
    // Predicated region
    $region30: #{tpu_custom_call.1} parent=1 // pred_check
      _
    $region31: #{tpu_custom_call.1} parent=1 // pred_check_branch
      %81 = sbr.rel (0) target = $region33
    $region32: #{tpu_custom_call.1} parent=1 // pred_region
      %82 = dma.done [#allocation3], 256
    $region33: #{tpu_custom_call.1} parent=1 // pred_fallthru
      _
    // Predicated region
    $region34: #{tpu_custom_call.1} parent=1 // pred_check
      _
    $region35: #{tpu_custom_call.1} parent=1 // pred_check_branch
      %84 = sbr.rel (0) target = $region37
    $region36: #{tpu_custom_call.1} parent=1 // pred_region
      %85 = dma.done [#allocation6], 256
    $region37: #{tpu_custom_call.1} parent=1 // pred_fallthru
      _
    // Predicated region
    $region38: #{tpu_custom_call.1} parent=1 // pred_check
      _
    $region39: #{tpu_custom_call.1} parent=1 // pred_check_branch
      %87 = sbr.rel (0) target = $region41
    $region40: #{tpu_custom_call.1} parent=1 // pred_region
      %88 = dma.done [#allocation6], 256
    $region41: #{tpu_custom_call.1} parent=1 // pred_fallthru
      _
    // Predicated region
    $region42: #{tpu_custom_call.1} parent=1 // pred_check
      _
    $region43: #{tpu_custom_call.1} parent=1 // pred_check_branch
      %90 = sbr.rel (0) target = $region45
    $region44: #{tpu_custom_call.1} parent=1 // pred_region
      %91 = dma.done [#allocation9], 768
    $region45: #{tpu_custom_call.1} parent=1 // pred_fallthru
      _
    // Predicated region
    $region46: #{tpu_custom_call.1} parent=1 // pred_check
      _
    $region47: #{tpu_custom_call.1} parent=1 // pred_check_branch
      %93 = sbr.rel (0) target = $region49
    $region48: #{tpu_custom_call.1} parent=1 // pred_region
      %94 = dma.done [#allocation9], 48
    $region49: #{tpu_custom_call.1} parent=1 // pred_fallthru
      _
    %v96 = vld [vmem:[#allocation2] sm:$0xff]
    %v97 = vld [vmem:[#allocation2 + $0x8] sm:$0xff]
    %v98 = vpack.c.bf16 %v97, %v96
    %v99 = vld [vmem:[#allocation8] sm:$0xf]
    %v100 = vld [vmem:[#allocation8 + $0x4] sm:$0xf]
    %v101 = vld [vmem:[#allocation8 + $0x8] sm:$0xf]
    %v102 = vld [vmem:[#allocation8 + $0xc] sm:$0xf]
    %v103 = vld [vmem:[#allocation10] sm:$0x1]
    %v105 = vlaneseq
    %v106 = vshrl.u32 %v105, 7
    %v107 = vsub.s32 0, %v106
    %v108 = vrot.slane %v103, %v107
    %v114 = vunpack.c.l.b16 %v99
    %v115 = vunpack.c.l.b16 %v100
    %v116 = vunpack.c.l.b16 %v101
    %v117 = vunpack.c.l.b16 %v102
    %v118 = vpack.c.b16 %v115, %v114
    %v119 = vpack.c.b16 %v117, %v116
    %vm122 = vcmask 261120
    %v124 = vsel %vm122, %v98, 0
    %126 = vmatprep.subr.bf16.mxu0 0
    %127 = vmatpush1.bf16.msra.mxu0 %v118
    %128 = vmatprep.subr.bf16.mxu0 0
    %129 = vmatpush1.bf16.msra.mxu0 %v119
    %130 = vmatprep.subr.bf16.mxu0 0
    %131 = vmatpush1.bf16.msra.mxu0 0
    %132 = vmatprep.subr.bf16.mxu0 0
    %133 = vmatpush1.bf16.msra.mxu0 0
    %134 = vmatprep.subr.bf16.mxu0 0
    %135 = vmatpush1.bf16.msra.mxu0 0
    %136 = vmatprep.subr.bf16.mxu0 0
    %137 = vmatpush1.bf16.msra.mxu0 0
    %138 = vmatprep.subr.bf16.mxu0 0
    %139 = vmatpush1.bf16.msra.mxu0 0
    %140 = vmatprep.subr.bf16.mxu0 0
    %141 = vmatpush1.bf16.msra.mxu0 0
    %142 = vmatprep.subr.bf16.mxu0 0
    %143 = vmatpush1.bf16.msra.mxu0 0
    %144 = vmatprep.subr.bf16.mxu0 0
    %145 = vmatpush1.bf16.msra.mxu0 0
    %146 = vmatprep.subr.bf16.mxu0 0
    %147 = vmatpush1.bf16.msra.mxu0 0
    %148 = vmatprep.subr.bf16.mxu0 0
    %149 = vmatpush1.bf16.msra.mxu0 0
    %150 = vmatprep.subr.bf16.mxu0 0
    %151 = vmatpush1.bf16.msra.mxu0 0
    %152 = vmatprep.subr.bf16.mxu0 0
    %153 = vmatpush1.bf16.msra.mxu0 0
    %154 = vmatprep.subr.bf16.mxu0 0
    %155 = vmatpush1.bf16.msra.mxu0 0
    %156 = vmatprep.subr.bf16.mxu0 0
    %157 = vmatpush1.bf16.msra.mxu0 0
    %158 = vmatprep.mubr.bf16.mxu0 0
    %159 = vmatmul.mubr.bf16.gmra.mrb[0].mxu0 %v124
    %v160 = vpop.f32.mrb[0].mxu0
    %v161 = vadd.f32 %v108, %v160
    %v162 = vpop.f32.mrb[0].mxu0
    %v163 = vpop.f32.mrb[0].mxu0
    %v164 = vadd.f32 %v108, %v163
    %v165 = vpop.f32.mrb[0].mxu0
    %166 = vdwg.mxu0
    %v167 = vld [vmem:[#allocation5] sm:$0xff]
    %v168 = vld [vmem:[#allocation5 + $0x8] sm:$0xff]
    %v169 = vpack.c.bf16 %v168, %v167
    %s170 = scalar_lea.vmem [#allocation8], 16
    %v171 = vld [vmem:[%s170] sm:$0xf]
    %v172 = vld [vmem:[%s170 + $0x4] sm:$0xf]
    %v173 = vld [vmem:[%s170 + $0x8] sm:$0xf]
    %v174 = vld [vmem:[%s170 + $0xc] sm:$0xf]
    %s175 = scalar_lea.vmem [#allocation10], 1
    %v176 = vld [vmem:[%s175] sm:$0x1]
    %v178 = vlaneseq
    %v179 = vshrl.u32 %v178, 7
    %v180 = vsub.s32 0, %v179
    %v181 = vrot.slane %v176, %v180
    %v187 = vunpack.c.l.b16 %v171
    %v188 = vunpack.c.l.b16 %v172
    %v189 = vunpack.c.l.b16 %v173
    %v190 = vunpack.c.l.b16 %v174
    %v191 = vpack.c.b16 %v188, %v187
    %v192 = vpack.c.b16 %v190, %v189
    %v196 = vsel %vm122, %v169, 0
    %198 = vmatprep.subr.bf16.mxu0 0
    %199 = vmatpush1.bf16.msra.mxu0 %v191
    %200 = vmatprep.subr.bf16.mxu0 0
    %201 = vmatpush1.bf16.msra.mxu0 %v192
    %202 = vmatprep.subr.bf16.mxu0 0
    %203 = vmatpush1.bf16.msra.mxu0 0
    %204 = vmatprep.subr.bf16.mxu0 0
    %205 = vmatpush1.bf16.msra.mxu0 0
    %206 = vmatprep.subr.bf16.mxu0 0
    %207 = vmatpush1.bf16.msra.mxu0 0
    %208 = vmatprep.subr.bf16.mxu0 0
    %209 = vmatpush1.bf16.msra.mxu0 0
    %210 = vmatprep.subr.bf16.mxu0 0
    %211 = vmatpush1.bf16.msra.mxu0 0
    %212 = vmatprep.subr.bf16.mxu0 0
    %213 = vmatpush1.bf16.msra.mxu0 0
    %214 = vmatprep.subr.bf16.mxu0 0
    %215 = vmatpush1.bf16.msra.mxu0 0
    %216 = vmatprep.subr.bf16.mxu0 0
    %217 = vmatpush1.bf16.msra.mxu0 0
    %218 = vmatprep.subr.bf16.mxu0 0
    %219 = vmatpush1.bf16.msra.mxu0 0
    %220 = vmatprep.subr.bf16.mxu0 0
    %221 = vmatpush1.bf16.msra.mxu0 0
    %222 = vmatprep.subr.bf16.mxu0 0
    %223 = vmatpush1.bf16.msra.mxu0 0
    %224 = vmatprep.subr.bf16.mxu0 0
    %225 = vmatpush1.bf16.msra.mxu0 0
    %226 = vmatprep.subr.bf16.mxu0 0
    %227 = vmatpush1.bf16.msra.mxu0 0
    %228 = vmatprep.subr.bf16.mxu0 0
    %229 = vmatpush1.bf16.msra.mxu0 0
    %230 = vmatprep.mubr.bf16.mxu0 0
    %231 = vmatmul.mubr.bf16.gmra.mrb[0].mxu0 %v196
    %v232 = vpop.f32.mrb[0].mxu0
    %v233 = vadd.f32 %v181, %v232
    %v234 = vpop.f32.mrb[0].mxu0
    %v235 = vpop.f32.mrb[0].mxu0
    %v236 = vadd.f32 %v181, %v235
    %v237 = vpop.f32.mrb[0].mxu0
    %238 = vdwg.mxu0
    %v239 = vld [vmem:[#allocation7] sm:$0xff]
    %v240 = vld [vmem:[#allocation7 + $0x8] sm:$0xff]
    %v241 = vpack.c.bf16 %v240, %v239
    %s242 = scalar_lea.vmem [#allocation8], 32
    %v243 = vld [vmem:[%s242] sm:$0xf]
    %v244 = vld [vmem:[%s242 + $0x4] sm:$0xf]
    %v245 = vld [vmem:[%s242 + $0x8] sm:$0xf]
    %v246 = vld [vmem:[%s242 + $0xc] sm:$0xf]
    %s247 = scalar_lea.vmem [#allocation10], 2
    %v248 = vld [vmem:[%s247] sm:$0x1]
    %v250 = vlaneseq
    %v251 = vshrl.u32 %v250, 7
    %v252 = vsub.s32 0, %v251
    %v253 = vrot.slane %v248, %v252
    %v259 = vunpack.c.l.b16 %v243
    %v260 = vunpack.c.l.b16 %v244
    %v261 = vunpack.c.l.b16 %v245
    %v262 = vunpack.c.l.b16 %v246
    %v263 = vpack.c.b16 %v260, %v259
    %v264 = vpack.c.b16 %v262, %v261
    %v268 = vsel %vm122, %v241, 0
    %270 = vmatprep.subr.bf16.mxu0 0
    %271 = vmatpush1.bf16.msra.mxu0 %v263
    %272 = vmatprep.subr.bf16.mxu0 0
    %273 = vmatpush1.bf16.msra.mxu0 %v264
    %274 = vmatprep.subr.bf16.mxu0 0
    %275 = vmatpush1.bf16.msra.mxu0 0
    %276 = vmatprep.subr.bf16.mxu0 0
    %277 = vmatpush1.bf16.msra.mxu0 0
    %278 = vmatprep.subr.bf16.mxu0 0
    %279 = vmatpush1.bf16.msra.mxu0 0
    %280 = vmatprep.subr.bf16.mxu0 0
    %281 = vmatpush1.bf16.msra.mxu0 0
    %282 = vmatprep.subr.bf16.mxu0 0
    %283 = vmatpush1.bf16.msra.mxu0 0
    %284 = vmatprep.subr.bf16.mxu0 0
    %285 = vmatpush1.bf16.msra.mxu0 0
    %286 = vmatprep.subr.bf16.mxu0 0
    %287 = vmatpush1.bf16.msra.mxu0 0
    %288 = vmatprep.subr.bf16.mxu0 0
    %289 = vmatpush1.bf16.msra.mxu0 0
    %290 = vmatprep.subr.bf16.mxu0 0
    %291 = vmatpush1.bf16.msra.mxu0 0
    %292 = vmatprep.subr.bf16.mxu0 0
    %293 = vmatpush1.bf16.msra.mxu0 0
    %294 = vmatprep.subr.bf16.mxu0 0
    %295 = vmatpush1.bf16.msra.mxu0 0
    %296 = vmatprep.subr.bf16.mxu0 0
    %297 = vmatpush1.bf16.msra.mxu0 0
    %298 = vmatprep.subr.bf16.mxu0 0
    %299 = vmatpush1.bf16.msra.mxu0 0
    %300 = vmatprep.subr.bf16.mxu0 0
    %301 = vmatpush1.bf16.msra.mxu0 0
    %302 = vmatprep.mubr.bf16.mxu0 0
    %303 = vmatmul.mubr.bf16.gmra.mrb[0].mxu0 %v268
    %v304 = vpop.f32.mrb[0].mxu0
    %v305 = vadd.f32 %v253, %v304
    %v306 = vpop.f32.mrb[0].mxu0
    %v307 = vpop.f32.mrb[0].mxu0
    %v308 = vadd.f32 %v253, %v307
    %v309 = vpop.f32.mrb[0].mxu0
    %310 = vdwg.mxu0
    %v311 = vmul.f32 %v161, 0.35355338
    %v312 = vmul.f32 %v164, 0.35355338
    %314 = vrot.lane.b32.xlu0 %v311, 120
    %v315 = vpop.permute.xlu0 %314
    %317 = vrot.lane.b32.xlu0 %v311, 112
    %v318 = vpop.permute.xlu0 %317
    %320 = vrot.lane.b32.xlu0 %v311, 104
    %v321 = vpop.permute.xlu0 %320
    %324 = vrot.lane.b32.xlu0 %v312, 120
    %v325 = vpop.permute.xlu0 %324
    %327 = vrot.lane.b32.xlu0 %v312, 112
    %v328 = vpop.permute.xlu0 %327
    %330 = vrot.lane.b32.xlu0 %v312, 104
    %v331 = vpop.permute.xlu0 %330
    %v333 = vpack.c.bf16 %v311, %v311
    %v334 = vpack.c.bf16 %v315, %v315
    %v335 = vpack.c.bf16 %v318, %v318
    %v336 = vpack.c.bf16 %v321, %v321
    %v337 = vpack.c.bf16 %v312, %v312
    %v338 = vpack.c.bf16 %v325, %v325
    %v339 = vpack.c.bf16 %v328, %v328
    %v340 = vpack.c.bf16 %v331, %v331
    %342 = vrot.lane.b32.xlu0 %v233, 120
    %v343 = vpop.permute.xlu0 %342
    %345 = vrot.lane.b32.xlu0 %v233, 112
    %v346 = vpop.permute.xlu0 %345
    %348 = vrot.lane.b32.xlu0 %v233, 104
    %v349 = vpop.permute.xlu0 %348
    %352 = vrot.lane.b32.xlu0 %v236, 120
    %v353 = vpop.permute.xlu0 %352
    %355 = vrot.lane.b32.xlu0 %v236, 112
    %v356 = vpop.permute.xlu0 %355
    %358 = vrot.lane.b32.xlu0 %v236, 104
    %v359 = vpop.permute.xlu0 %358
    %v361 = vpack.c.bf16 %v233, %v233
    %v362 = vpack.c.bf16 %v343, %v343
    %v363 = vpack.c.bf16 %v346, %v346
    %v364 = vpack.c.bf16 %v349, %v349
    %v365 = vpack.c.bf16 %v236, %v236
    %v366 = vpack.c.bf16 %v353, %v353
    %v367 = vpack.c.bf16 %v356, %v356
    %v368 = vpack.c.bf16 %v359, %v359
    %370 = vrot.lane.b32.xlu0 %v305, 120
    %v371 = vpop.permute.xlu0 %370
    %373 = vrot.lane.b32.xlu0 %v305, 112
    %v374 = vpop.permute.xlu0 %373
    %376 = vrot.lane.b32.xlu0 %v305, 104
    %v377 = vpop.permute.xlu0 %376
    %380 = vrot.lane.b32.xlu0 %v308, 120
    %v381 = vpop.permute.xlu0 %380
    %383 = vrot.lane.b32.xlu0 %v308, 112
    %v384 = vpop.permute.xlu0 %383
    %386 = vrot.lane.b32.xlu0 %v308, 104
    %v387 = vpop.permute.xlu0 %386
    %v389 = vpack.c.bf16 %v305, %v305
    %v390 = vpack.c.bf16 %v371, %v371
    %v391 = vpack.c.bf16 %v374, %v374
    %v392 = vpack.c.bf16 %v377, %v377
    %v393 = vpack.c.bf16 %v308, %v308
    %v394 = vpack.c.bf16 %v381, %v381
    %v395 = vpack.c.bf16 %v384, %v384
    %v396 = vpack.c.bf16 %v387, %v387
    %vm397 = vcmask 64512
    %v399 = vsel %vm397, %v333, 0
    %v402 = vsel %vm397, %v361, 0
    %404 = vmatprep.subr.bf16.mxu0 0
    %405 = vmatpush1.bf16.xpose.msra.mxu0 %v402
    %406 = vmatprep.subr.bf16.mxu0 0
    %407 = vmatpush1.bf16.xpose.msra.mxu0 0
    %408 = vmatprep.subr.bf16.mxu0 0
    %409 = vmatpush1.bf16.xpose.msra.mxu0 0
    %410 = vmatprep.subr.bf16.mxu0 0
    %411 = vmatpush1.bf16.xpose.msra.mxu0 0
    %412 = vmatprep.subr.bf16.mxu0 0
    %413 = vmatpush1.bf16.xpose.msra.mxu0 0
    %414 = vmatprep.subr.bf16.mxu0 0
    %415 = vmatpush1.bf16.xpose.msra.mxu0 0
    %416 = vmatprep.subr.bf16.mxu0 0
    %417 = vmatpush1.bf16.xpose.msra.mxu0 0
    %418 = vmatprep.subr.bf16.mxu0 0
    %419 = vmatpush1.bf16.xpose.msra.mxu0 0
    %420 = vmatprep.subr.bf16.mxu0 0
    %421 = vmatpush1.bf16.xpose.msra.mxu0 0
    %422 = vmatprep.subr.bf16.mxu0 0
    %423 = vmatpush1.bf16.xpose.msra.mxu0 0
    %424 = vmatprep.subr.bf16.mxu0 0
    %425 = vmatpush1.bf16.xpose.msra.mxu0 0
    %426 = vmatprep.subr.bf16.mxu0 0
    %427 = vmatpush1.bf16.xpose.msra.mxu0 0
    %428 = vmatprep.subr.bf16.mxu0 0
    %429 = vmatpush1.bf16.xpose.msra.mxu0 0
    %430 = vmatprep.subr.bf16.mxu0 0
    %431 = vmatpush1.bf16.xpose.msra.mxu0 0
    %432 = vmatprep.subr.bf16.mxu0 0
    %433 = vmatpush1.bf16.xpose.msra.mxu0 0
    %434 = vmatprep.subr.bf16.mxu0 0
    %435 = vmatpush1.bf16.xpose.msra.mxu0 0
    %436 = vmatprep.mubr.bf16.mxu0 0
    %437 = vmatmul.mubr.bf16.gmra.mrb[0].mxu0 %v399
    %v438 = vpop.f32.mrb[0].mxu0
    %v439 = vadd.f32 0.0, %v438
    %v440 = vpop.f32.mrb[0].mxu0
    %v441 = vpop.f32.mrb[0].mxu0
    %v442 = vpop.f32.mrb[0].mxu0
    %443 = vdwg.mxu0
    %v445 = vsel %vm397, %v334, 0
    %v448 = vsel %vm397, %v362, 0
    %450 = vmatprep.subr.bf16.mxu0 0
    %451 = vmatpush1.bf16.xpose.msra.mxu0 %v448
    %452 = vmatprep.subr.bf16.mxu0 0
    %453 = vmatpush1.bf16.xpose.msra.mxu0 0
    %454 = vmatprep.subr.bf16.mxu0 0
    %455 = vmatpush1.bf16.xpose.msra.mxu0 0
    %456 = vmatprep.subr.bf16.mxu0 0
    %457 = vmatpush1.bf16.xpose.msra.mxu0 0
    %458 = vmatprep.subr.bf16.mxu0 0
    %459 = vmatpush1.bf16.xpose.msra.mxu0 0
    %460 = vmatprep.subr.bf16.mxu0 0
    %461 = vmatpush1.bf16.xpose.msra.mxu0 0
    %462 = vmatprep.subr.bf16.mxu0 0
    %463 = vmatpush1.bf16.xpose.msra.mxu0 0
    %464 = vmatprep.subr.bf16.mxu0 0
    %465 = vmatpush1.bf16.xpose.msra.mxu0 0
    %466 = vmatprep.subr.bf16.mxu0 0
    %467 = vmatpush1.bf16.xpose.msra.mxu0 0
    %468 = vmatprep.subr.bf16.mxu0 0
    %469 = vmatpush1.bf16.xpose.msra.mxu0 0
    %470 = vmatprep.subr.bf16.mxu0 0
    %471 = vmatpush1.bf16.xpose.msra.mxu0 0
    %472 = vmatprep.subr.bf16.mxu0 0
    %473 = vmatpush1.bf16.xpose.msra.mxu0 0
    %474 = vmatprep.subr.bf16.mxu0 0
    %475 = vmatpush1.bf16.xpose.msra.mxu0 0
    %476 = vmatprep.subr.bf16.mxu0 0
    %477 = vmatpush1.bf16.xpose.msra.mxu0 0
    %478 = vmatprep.subr.bf16.mxu0 0
    %479 = vmatpush1.bf16.xpose.msra.mxu0 0
    %480 = vmatprep.subr.bf16.mxu0 0
    %481 = vmatpush1.bf16.xpose.msra.mxu0 0
    %482 = vmatprep.mubr.bf16.mxu0 0
    %483 = vmatmul.mubr.bf16.gmra.mrb[0].mxu0 %v445
    %v484 = vpop.f32.mrb[0].mxu0
    %v485 = vadd.f32 0.0, %v484
    %v486 = vpop.f32.mrb[0].mxu0
    %v487 = vpop.f32.mrb[0].mxu0
    %v488 = vpop.f32.mrb[0].mxu0
    %489 = vdwg.mxu0
    %v491 = vsel %vm397, %v335, 0
    %v494 = vsel %vm397, %v363, 0
    %496 = vmatprep.subr.bf16.mxu0 0
    %497 = vmatpush1.bf16.xpose.msra.mxu0 %v494
    %498 = vmatprep.subr.bf16.mxu0 0
    %499 = vmatpush1.bf16.xpose.msra.mxu0 0
    %500 = vmatprep.subr.bf16.mxu0 0
    %501 = vmatpush1.bf16.xpose.msra.mxu0 0
    %502 = vmatprep.subr.bf16.mxu0 0
    %503 = vmatpush1.bf16.xpose.msra.mxu0 0
    %504 = vmatprep.subr.bf16.mxu0 0
    %505 = vmatpush1.bf16.xpose.msra.mxu0 0
    %506 = vmatprep.subr.bf16.mxu0 0
    %507 = vmatpush1.bf16.xpose.msra.mxu0 0
    %508 = vmatprep.subr.bf16.mxu0 0
    %509 = vmatpush1.bf16.xpose.msra.mxu0 0
    %510 = vmatprep.subr.bf16.mxu0 0
    %511 = vmatpush1.bf16.xpose.msra.mxu0 0
    %512 = vmatprep.subr.bf16.mxu0 0
    %513 = vmatpush1.bf16.xpose.msra.mxu0 0
    %514 = vmatprep.subr.bf16.mxu0 0
    %515 = vmatpush1.bf16.xpose.msra.mxu0 0
    %516 = vmatprep.subr.bf16.mxu0 0
    %517 = vmatpush1.bf16.xpose.msra.mxu0 0
    %518 = vmatprep.subr.bf16.mxu0 0
    %519 = vmatpush1.bf16.xpose.msra.mxu0 0
    %520 = vmatprep.subr.bf16.mxu0 0
    %521 = vmatpush1.bf16.xpose.msra.mxu0 0
    %522 = vmatprep.subr.bf16.mxu0 0
    %523 = vmatpush1.bf16.xpose.msra.mxu0 0
    %524 = vmatprep.subr.bf16.mxu0 0
    %525 = vmatpush1.bf16.xpose.msra.mxu0 0
    %526 = vmatprep.subr.bf16.mxu0 0
    %527 = vmatpush1.bf16.xpose.msra.mxu0 0
    %528 = vmatprep.mubr.bf16.mxu0 0
    %529 = vmatmul.mubr.bf16.gmra.mrb[0].mxu0 %v491
    %v530 = vpop.f32.mrb[0].mxu0
    %v531 = vadd.f32 0.0, %v530
    %v532 = vpop.f32.mrb[0].mxu0
    %v533 = vpop.f32.mrb[0].mxu0
    %v534 = vpop.f32.mrb[0].mxu0
    %535 = vdwg.mxu0
    %v537 = vsel %vm397, %v336, 0
    %v540 = vsel %vm397, %v364, 0
    %542 = vmatprep.subr.bf16.mxu0 0
    %543 = vmatpush1.bf16.xpose.msra.mxu0 %v540
    %544 = vmatprep.subr.bf16.mxu0 0
    %545 = vmatpush1.bf16.xpose.msra.mxu0 0
    %546 = vmatprep.subr.bf16.mxu0 0
    %547 = vmatpush1.bf16.xpose.msra.mxu0 0
    %548 = vmatprep.subr.bf16.mxu0 0
    %549 = vmatpush1.bf16.xpose.msra.mxu0 0
    %550 = vmatprep.subr.bf16.mxu0 0
    %551 = vmatpush1.bf16.xpose.msra.mxu0 0
    %552 = vmatprep.subr.bf16.mxu0 0
    %553 = vmatpush1.bf16.xpose.msra.mxu0 0
    %554 = vmatprep.subr.bf16.mxu0 0
    %555 = vmatpush1.bf16.xpose.msra.mxu0 0
    %556 = vmatprep.subr.bf16.mxu0 0
    %557 = vmatpush1.bf16.xpose.msra.mxu0 0
    %558 = vmatprep.subr.bf16.mxu0 0
    %559 = vmatpush1.bf16.xpose.msra.mxu0 0
    %560 = vmatprep.subr.bf16.mxu0 0
    %561 = vmatpush1.bf16.xpose.msra.mxu0 0
    %562 = vmatprep.subr.bf16.mxu0 0
    %563 = vmatpush1.bf16.xpose.msra.mxu0 0
    %564 = vmatprep.subr.bf16.mxu0 0
    %565 = vmatpush1.bf16.xpose.msra.mxu0 0
    %566 = vmatprep.subr.bf16.mxu0 0
    %567 = vmatpush1.bf16.xpose.msra.mxu0 0
    %568 = vmatprep.subr.bf16.mxu0 0
    %569 = vmatpush1.bf16.xpose.msra.mxu0 0
    %570 = vmatprep.subr.bf16.mxu0 0
    %571 = vmatpush1.bf16.xpose.msra.mxu0 0
    %572 = vmatprep.subr.bf16.mxu0 0
    %573 = vmatpush1.bf16.xpose.msra.mxu0 0
    %574 = vmatprep.mubr.bf16.mxu0 0
    %575 = vmatmul.mubr.bf16.gmra.mrb[0].mxu0 %v537
    %v576 = vpop.f32.mrb[0].mxu0
    %v577 = vadd.f32 0.0, %v576
    %v578 = vpop.f32.mrb[0].mxu0
    %v579 = vpop.f32.mrb[0].mxu0
    %v580 = vpop.f32.mrb[0].mxu0
    %581 = vdwg.mxu0
    %v583 = vsel %vm397, %v337, 0
    %v586 = vsel %vm397, %v365, 0
    %588 = vmatprep.subr.bf16.mxu0 0
    %589 = vmatpush1.bf16.xpose.msra.mxu0 %v586
    %590 = vmatprep.subr.bf16.mxu0 0
    %591 = vmatpush1.bf16.xpose.msra.mxu0 0
    %592 = vmatprep.subr.bf16.mxu0 0
    %593 = vmatpush1.bf16.xpose.msra.mxu0 0
    %594 = vmatprep.subr.bf16.mxu0 0
    %595 = vmatpush1.bf16.xpose.msra.mxu0 0
    %596 = vmatprep.subr.bf16.mxu0 0
    %597 = vmatpush1.bf16.xpose.msra.mxu0 0
    %598 = vmatprep.subr.bf16.mxu0 0
    %599 = vmatpush1.bf16.xpose.msra.mxu0 0
    %600 = vmatprep.subr.bf16.mxu0 0
    %601 = vmatpush1.bf16.xpose.msra.mxu0 0
    %602 = vmatprep.subr.bf16.mxu0 0
    %603 = vmatpush1.bf16.xpose.msra.mxu0 0
    %604 = vmatprep.subr.bf16.mxu0 0
    %605 = vmatpush1.bf16.xpose.msra.mxu0 0
    %606 = vmatprep.subr.bf16.mxu0 0
    %607 = vmatpush1.bf16.xpose.msra.mxu0 0
    %608 = vmatprep.subr.bf16.mxu0 0
    %609 = vmatpush1.bf16.xpose.msra.mxu0 0
    %610 = vmatprep.subr.bf16.mxu0 0
    %611 = vmatpush1.bf16.xpose.msra.mxu0 0
    %612 = vmatprep.subr.bf16.mxu0 0
    %613 = vmatpush1.bf16.xpose.msra.mxu0 0
    %614 = vmatprep.subr.bf16.mxu0 0
    %615 = vmatpush1.bf16.xpose.msra.mxu0 0
    %616 = vmatprep.subr.bf16.mxu0 0
    %617 = vmatpush1.bf16.xpose.msra.mxu0 0
    %618 = vmatprep.subr.bf16.mxu0 0
    %619 = vmatpush1.bf16.xpose.msra.mxu0 0
    %620 = vmatprep.mubr.bf16.mxu0 0
    %621 = vmatmul.mubr.bf16.gmra.mrb[0].mxu0 %v583
    %v622 = vpop.f32.mrb[0].mxu0
    %v623 = vadd.f32 0.0, %v622
    %v624 = vpop.f32.mrb[0].mxu0
    %v625 = vpop.f32.mrb[0].mxu0
    %v626 = vpop.f32.mrb[0].mxu0
    %627 = vdwg.mxu0
    %v629 = vsel %vm397, %v338, 0
    %v632 = vsel %vm397, %v366, 0
    %634 = vmatprep.subr.bf16.mxu0 0
    %635 = vmatpush1.bf16.xpose.msra.mxu0 %v632
    %636 = vmatprep.subr.bf16.mxu0 0
    %637 = vmatpush1.bf16.xpose.msra.mxu0 0
    %638 = vmatprep.subr.bf16.mxu0 0
    %639 = vmatpush1.bf16.xpose.msra.mxu0 0
    %640 = vmatprep.subr.bf16.mxu0 0
    %641 = vmatpush1.bf16.xpose.msra.mxu0 0
    %642 = vmatprep.subr.bf16.mxu0 0
    %643 = vmatpush1.bf16.xpose.msra.mxu0 0
    %644 = vmatprep.subr.bf16.mxu0 0
    %645 = vmatpush1.bf16.xpose.msra.mxu0 0
    %646 = vmatprep.subr.bf16.mxu0 0
    %647 = vmatpush1.bf16.xpose.msra.mxu0 0
    %648 = vmatprep.subr.bf16.mxu0 0
    %649 = vmatpush1.bf16.xpose.msra.mxu0 0
    %650 = vmatprep.subr.bf16.mxu0 0
    %651 = vmatpush1.bf16.xpose.msra.mxu0 0
    %652 = vmatprep.subr.bf16.mxu0 0
    %653 = vmatpush1.bf16.xpose.msra.mxu0 0
    %654 = vmatprep.subr.bf16.mxu0 0
    %655 = vmatpush1.bf16.xpose.msra.mxu0 0
    %656 = vmatprep.subr.bf16.mxu0 0
    %657 = vmatpush1.bf16.xpose.msra.mxu0 0
    %658 = vmatprep.subr.bf16.mxu0 0
    %659 = vmatpush1.bf16.xpose.msra.mxu0 0
    %660 = vmatprep.subr.bf16.mxu0 0
    %661 = vmatpush1.bf16.xpose.msra.mxu0 0
    %662 = vmatprep.subr.bf16.mxu0 0
    %663 = vmatpush1.bf16.xpose.msra.mxu0 0
    %664 = vmatprep.subr.bf16.mxu0 0
    %665 = vmatpush1.bf16.xpose.msra.mxu0 0
    %666 = vmatprep.mubr.bf16.mxu0 0
    %667 = vmatmul.mubr.bf16.gmra.mrb[0].mxu0 %v629
    %v668 = vpop.f32.mrb[0].mxu0
    %v669 = vadd.f32 0.0, %v668
    %v670 = vpop.f32.mrb[0].mxu0
    %v671 = vpop.f32.mrb[0].mxu0
    %v672 = vpop.f32.mrb[0].mxu0
    %673 = vdwg.mxu0
    %v675 = vsel %vm397, %v339, 0
    %v678 = vsel %vm397, %v367, 0
    %680 = vmatprep.subr.bf16.mxu0 0
    %681 = vmatpush1.bf16.xpose.msra.mxu0 %v678
    %682 = vmatprep.subr.bf16.mxu0 0
    %683 = vmatpush1.bf16.xpose.msra.mxu0 0
    %684 = vmatprep.subr.bf16.mxu0 0
    %685 = vmatpush1.bf16.xpose.msra.mxu0 0
    %686 = vmatprep.subr.bf16.mxu0 0
    %687 = vmatpush1.bf16.xpose.msra.mxu0 0
    %688 = vmatprep.subr.bf16.mxu0 0
    %689 = vmatpush1.bf16.xpose.msra.mxu0 0
    %690 = vmatprep.subr.bf16.mxu0 0
    %691 = vmatpush1.bf16.xpose.msra.mxu0 0
    %692 = vmatprep.subr.bf16.mxu0 0
    %693 = vmatpush1.bf16.xpose.msra.mxu0 0
    %694 = vmatprep.subr.bf16.mxu0 0
    %695 = vmatpush1.bf16.xpose.msra.mxu0 0
    %696 = vmatprep.subr.bf16.mxu0 0
    %697 = vmatpush1.bf16.xpose.msra.mxu0 0
    %698 = vmatprep.subr.bf16.mxu0 0
    %699 = vmatpush1.bf16.xpose.msra.mxu0 0
    %700 = vmatprep.subr.bf16.mxu0 0
    %701 = vmatpush1.bf16.xpose.msra.mxu0 0
    %702 = vmatprep.subr.bf16.mxu0 0
    %703 = vmatpush1.bf16.xpose.msra.mxu0 0
    %704 = vmatprep.subr.bf16.mxu0 0
    %705 = vmatpush1.bf16.xpose.msra.mxu0 0
    %706 = vmatprep.subr.bf16.mxu0 0
    %707 = vmatpush1.bf16.xpose.msra.mxu0 0
    %708 = vmatprep.subr.bf16.mxu0 0
    %709 = vmatpush1.bf16.xpose.msra.mxu0 0
    %710 = vmatprep.subr.bf16.mxu0 0
    %711 = vmatpush1.bf16.xpose.msra.mxu0 0
    %712 = vmatprep.mubr.bf16.mxu0 0
    %713 = vmatmul.mubr.bf16.gmra.mrb[0].mxu0 %v675
    %v714 = vpop.f32.mrb[0].mxu0
    %v715 = vadd.f32 0.0, %v714
    %v716 = vpop.f32.mrb[0].mxu0
    %v717 = vpop.f32.mrb[0].mxu0
    %v718 = vpop.f32.mrb[0].mxu0
    %719 = vdwg.mxu0
    %v721 = vsel %vm397, %v340, 0
    %v724 = vsel %vm397, %v368, 0
    %726 = vmatprep.subr.bf16.mxu0 0
    %727 = vmatpush1.bf16.xpose.msra.mxu0 %v724
    %728 = vmatprep.subr.bf16.mxu0 0
    %729 = vmatpush1.bf16.xpose.msra.mxu0 0
    %730 = vmatprep.subr.bf16.mxu0 0
    %731 = vmatpush1.bf16.xpose.msra.mxu0 0
    %732 = vmatprep.subr.bf16.mxu0 0
    %733 = vmatpush1.bf16.xpose.msra.mxu0 0
    %734 = vmatprep.subr.bf16.mxu0 0
    %735 = vmatpush1.bf16.xpose.msra.mxu0 0
    %736 = vmatprep.subr.bf16.mxu0 0
    %737 = vmatpush1.bf16.xpose.msra.mxu0 0
    %738 = vmatprep.subr.bf16.mxu0 0
    %739 = vmatpush1.bf16.xpose.msra.mxu0 0
    %740 = vmatprep.subr.bf16.mxu0 0
    %741 = vmatpush1.bf16.xpose.msra.mxu0 0
    %742 = vmatprep.subr.bf16.mxu0 0
    %743 = vmatpush1.bf16.xpose.msra.mxu0 0
    %744 = vmatprep.subr.bf16.mxu0 0
    %745 = vmatpush1.bf16.xpose.msra.mxu0 0
    %746 = vmatprep.subr.bf16.mxu0 0
    %747 = vmatpush1.bf16.xpose.msra.mxu0 0
    %748 = vmatprep.subr.bf16.mxu0 0
    %749 = vmatpush1.bf16.xpose.msra.mxu0 0
    %750 = vmatprep.subr.bf16.mxu0 0
    %751 = vmatpush1.bf16.xpose.msra.mxu0 0
    %752 = vmatprep.subr.bf16.mxu0 0
    %753 = vmatpush1.bf16.xpose.msra.mxu0 0
    %754 = vmatprep.subr.bf16.mxu0 0
    %755 = vmatpush1.bf16.xpose.msra.mxu0 0
    %756 = vmatprep.subr.bf16.mxu0 0
    %757 = vmatpush1.bf16.xpose.msra.mxu0 0
    %758 = vmatprep.mubr.bf16.mxu0 0
    %759 = vmatmul.mubr.bf16.gmra.mrb[0].mxu0 %v721
    %v760 = vpop.f32.mrb[0].mxu0
    %v761 = vadd.f32 0.0, %v760
    %v762 = vpop.f32.mrb[0].mxu0
    %v763 = vpop.f32.mrb[0].mxu0
    %v764 = vpop.f32.mrb[0].mxu0
    %765 = vdwg.mxu0
    %v766 = vsel %vm397, %v439, -inf
    %767 = vmax.xlane.f32.xlu0 %v766
    %v768 = vpop.xlane.xlu0 %767
    %v769 = vsel %vm397, %v485, -inf
    %770 = vmax.xlane.f32.xlu0 %v769
    %v771 = vpop.xlane.xlu0 %770
    %v772 = vsel %vm397, %v531, -inf
    %773 = vmax.xlane.f32.xlu0 %v772
    %v774 = vpop.xlane.xlu0 %773
    %v775 = vsel %vm397, %v577, -inf
    %776 = vmax.xlane.f32.xlu0 %v775
    %v777 = vpop.xlane.xlu0 %776
    %v778 = vsel %vm397, %v623, -inf
    %779 = vmax.xlane.f32.xlu0 %v778
    %v780 = vpop.xlane.xlu0 %779
    %v781 = vsel %vm397, %v669, -inf
    %782 = vmax.xlane.f32.xlu0 %v781
    %v783 = vpop.xlane.xlu0 %782
    %v784 = vsel %vm397, %v715, -inf
    %785 = vmax.xlane.f32.xlu0 %v784
    %v786 = vpop.xlane.xlu0 %785
    %v787 = vsel %vm397, %v761, -inf
    %788 = vmax.xlane.f32.xlu0 %v787
    %v789 = vpop.xlane.xlu0 %788
    %v790 = vsub.f32 %v439, %v768
    %v791 = vsub.f32 %v485, %v771
    %v792 = vsub.f32 %v531, %v774
    %v793 = vsub.f32 %v577, %v777
    %v794 = vsub.f32 %v623, %v780
    %v795 = vsub.f32 %v669, %v783
    %v796 = vsub.f32 %v715, %v786
    %v797 = vsub.f32 %v761, %v789
    %v798 = vmul.f32 %v790, 1.442695
    %v799 = vpow.pop %v798
    %v800 = vmul.f32 %v791, 1.442695
    %v801 = vpow.pop %v800
    %v802 = vmul.f32 %v792, 1.442695
    %v803 = vpow.pop %v802
    %v804 = vmul.f32 %v793, 1.442695
    %v805 = vpow.pop %v804
    %v806 = vmul.f32 %v794, 1.442695
    %v807 = vpow.pop %v806
    %v808 = vmul.f32 %v795, 1.442695
    %v809 = vpow.pop %v808
    %v810 = vmul.f32 %v796, 1.442695
    %v811 = vpow.pop %v810
    %v812 = vmul.f32 %v797, 1.442695
    %v813 = vpow.pop %v812
    %v814 = vsel %vm397, %v799, 0.0
    %815 = vadd.xlane.f32.xlu0 %v814
    %v816 = vpop.xlane.xlu0 %815
    %v817 = vsel %vm397, %v801, 0.0
    %818 = vadd.xlane.f32.xlu0 %v817
    %v819 = vpop.xlane.xlu0 %818
    %v820 = vsel %vm397, %v803, 0.0
    %821 = vadd.xlane.f32.xlu0 %v820
    %v822 = vpop.xlane.xlu0 %821
    %v823 = vsel %vm397, %v805, 0.0
    %824 = vadd.xlane.f32.xlu0 %v823
    %v825 = vpop.xlane.xlu0 %824
    %v826 = vsel %vm397, %v807, 0.0
    %827 = vadd.xlane.f32.xlu0 %v826
    %v828 = vpop.xlane.xlu0 %827
    %v829 = vsel %vm397, %v809, 0.0
    %830 = vadd.xlane.f32.xlu0 %v829
    %v831 = vpop.xlane.xlu0 %830
    %v832 = vsel %vm397, %v811, 0.0
    %833 = vadd.xlane.f32.xlu0 %v832
    %v834 = vpop.xlane.xlu0 %833
    %v835 = vsel %vm397, %v813, 0.0
    %836 = vadd.xlane.f32.xlu0 %v835
    %v837 = vpop.xlane.xlu0 %836
    %v838 = vrcp.pop %v816
    %v839 = vrcp.pop %v819
    %v840 = vrcp.pop %v822
    %v841 = vrcp.pop %v825
    %v842 = vrcp.pop %v828
    %v843 = vrcp.pop %v831
    %v844 = vrcp.pop %v834
    %v845 = vrcp.pop %v837
    %v846 = vmul.f32 %v816, %v838
    %v847 = vmul.f32 %v819, %v839
    %v848 = vmul.f32 %v822, %v840
    %v849 = vmul.f32 %v825, %v841
    %v850 = vmul.f32 %v828, %v842
    %v851 = vmul.f32 %v831, %v843
    %v852 = vmul.f32 %v834, %v844
    %v853 = vmul.f32 %v837, %v845
    %v854 = vsub.f32 2.0, %v846
    %v855 = vsub.f32 2.0, %v847
    %v856 = vsub.f32 2.0, %v848
    %v857 = vsub.f32 2.0, %v849
    %v858 = vsub.f32 2.0, %v850
    %v859 = vsub.f32 2.0, %v851
    %v860 = vsub.f32 2.0, %v852
    %v861 = vsub.f32 2.0, %v853
    %v862 = vmul.f32 %v838, %v854
    %v863 = vmul.f32 %v839, %v855
    %v864 = vmul.f32 %v840, %v856
    %v865 = vmul.f32 %v841, %v857
    %v866 = vmul.f32 %v842, %v858
    %v867 = vmul.f32 %v843, %v859
    %v868 = vmul.f32 %v844, %v860
    %v869 = vmul.f32 %v845, %v861
    %v870 = vmul.f32 %v799, %v862
    %v871 = vmul.f32 %v801, %v863
    %v872 = vmul.f32 %v803, %v864
    %v873 = vmul.f32 %v805, %v865
    %v874 = vmul.f32 %v807, %v866
    %v875 = vmul.f32 %v809, %v867
    %v876 = vmul.f32 %v811, %v868
    %v877 = vmul.f32 %v813, %v869
    %v878 = vpack.c.bf16 %v870, %v870
    %v879 = vpack.c.bf16 %v871, %v871
    %v880 = vpack.c.bf16 %v872, %v872
    %v881 = vpack.c.bf16 %v873, %v873
    %v882 = vpack.c.bf16 %v874, %v874
    %v883 = vpack.c.bf16 %v875, %v875
    %v884 = vpack.c.bf16 %v876, %v876
    %v885 = vpack.c.bf16 %v877, %v877
    %v887 = vsel %vm397, %v878, 0
    %vm889 = vcmask 1043456
    %v891 = vsel %vm889, %v389, 0
    %893 = vmatprep.subr.bf16.mxu0 0
    %894 = vmatpush1.bf16.msra.mxu0 %v891
    %895 = vmatprep.subr.bf16.mxu0 0
    %896 = vmatpush1.bf16.msra.mxu0 0
    %897 = vmatprep.subr.bf16.mxu0 0
    %898 = vmatpush1.bf16.msra.mxu0 0
    %899 = vmatprep.subr.bf16.mxu0 0
    %900 = vmatpush1.bf16.msra.mxu0 0
    %901 = vmatprep.subr.bf16.mxu0 0
    %902 = vmatpush1.bf16.msra.mxu0 0
    %903 = vmatprep.subr.bf16.mxu0 0
    %904 = vmatpush1.bf16.msra.mxu0 0
    %905 = vmatprep.subr.bf16.mxu0 0
    %906 = vmatpush1.bf16.msra.mxu0 0
    %907 = vmatprep.subr.bf16.mxu0 0
    %908 = vmatpush1.bf16.msra.mxu0 0
    %909 = vmatprep.subr.bf16.mxu0 0
    %910 = vmatpush1.bf16.msra.mxu0 0
    %911 = vmatprep.subr.bf16.mxu0 0
    %912 = vmatpush1.bf16.msra.mxu0 0
    %913 = vmatprep.subr.bf16.mxu0 0
    %914 = vmatpush1.bf16.msra.mxu0 0
    %915 = vmatprep.subr.bf16.mxu0 0
    %916 = vmatpush1.bf16.msra.mxu0 0
    %917 = vmatprep.subr.bf16.mxu0 0
    %918 = vmatpush1.bf16.msra.mxu0 0
    %919 = vmatprep.subr.bf16.mxu0 0
    %920 = vmatpush1.bf16.msra.mxu0 0
    %921 = vmatprep.subr.bf16.mxu0 0
    %922 = vmatpush1.bf16.msra.mxu0 0
    %923 = vmatprep.subr.bf16.mxu0 0
    %924 = vmatpush1.bf16.msra.mxu0 0
    %925 = vmatprep.mubr.bf16.mxu0 0
    %926 = vmatmul.mubr.bf16.gmra.mrb[0].mxu0 %v887
    %v927 = vpop.f32.mrb[0].mxu0
    %v928 = vadd.f32 0.0, %v927
    %v929 = vpop.f32.mrb[0].mxu0
    %v930 = vpop.f32.mrb[0].mxu0
    %v931 = vpop.f32.mrb[0].mxu0
    %932 = vdwg.mxu0
    %v934 = vsel %vm397, %v879, 0
    %v937 = vsel %vm889, %v390, 0
    %939 = vmatprep.subr.bf16.mxu0 0
    %940 = vmatpush1.bf16.msra.mxu0 %v937
    %941 = vmatprep.subr.bf16.mxu0 0
    %942 = vmatpush1.bf16.msra.mxu0 0
    %943 = vmatprep.subr.bf16.mxu0 0
    %944 = vmatpush1.bf16.msra.mxu0 0
    %945 = vmatprep.subr.bf16.mxu0 0
    %946 = vmatpush1.bf16.msra.mxu0 0
    %947 = vmatprep.subr.bf16.mxu0 0
    %948 = vmatpush1.bf16.msra.mxu0 0
    %949 = vmatprep.subr.bf16.mxu0 0
    %950 = vmatpush1.bf16.msra.mxu0 0
    %951 = vmatprep.subr.bf16.mxu0 0
    %952 = vmatpush1.bf16.msra.mxu0 0
    %953 = vmatprep.subr.bf16.mxu0 0
    %954 = vmatpush1.bf16.msra.mxu0 0
    %955 = vmatprep.subr.bf16.mxu0 0
    %956 = vmatpush1.bf16.msra.mxu0 0
    %957 = vmatprep.subr.bf16.mxu0 0
    %958 = vmatpush1.bf16.msra.mxu0 0
    %959 = vmatprep.subr.bf16.mxu0 0
    %960 = vmatpush1.bf16.msra.mxu0 0
    %961 = vmatprep.subr.bf16.mxu0 0
    %962 = vmatpush1.bf16.msra.mxu0 0
    %963 = vmatprep.subr.bf16.mxu0 0
    %964 = vmatpush1.bf16.msra.mxu0 0
    %965 = vmatprep.subr.bf16.mxu0 0
    %966 = vmatpush1.bf16.msra.mxu0 0
    %967 = vmatprep.subr.bf16.mxu0 0
    %968 = vmatpush1.bf16.msra.mxu0 0
    %969 = vmatprep.subr.bf16.mxu0 0
    %970 = vmatpush1.bf16.msra.mxu0 0
    %971 = vmatprep.mubr.bf16.mxu0 0
    %972 = vmatmul.mubr.bf16.gmra.mrb[0].mxu0 %v934
    %v973 = vpop.f32.mrb[0].mxu0
    %v974 = vadd.f32 0.0, %v973
    %v975 = vpop.f32.mrb[0].mxu0
    %v976 = vpop.f32.mrb[0].mxu0
    %v977 = vpop.f32.mrb[0].mxu0
    %978 = vdwg.mxu0
    %v980 = vsel %vm397, %v880, 0
    %v983 = vsel %vm889, %v391, 0
    %985 = vmatprep.subr.bf16.mxu0 0
    %986 = vmatpush1.bf16.msra.mxu0 %v983
    %987 = vmatprep.subr.bf16.mxu0 0
    %988 = vmatpush1.bf16.msra.mxu0 0
    %989 = vmatprep.subr.bf16.mxu0 0
    %990 = vmatpush1.bf16.msra.mxu0 0
    %991 = vmatprep.subr.bf16.mxu0 0
    %992 = vmatpush1.bf16.msra.mxu0 0
    %993 = vmatprep.subr.bf16.mxu0 0
    %994 = vmatpush1.bf16.msra.mxu0 0
    %995 = vmatprep.subr.bf16.mxu0 0
    %996 = vmatpush1.bf16.msra.mxu0 0
    %997 = vmatprep.subr.bf16.mxu0 0
    %998 = vmatpush1.bf16.msra.mxu0 0
    %999 = vmatprep.subr.bf16.mxu0 0
    %1000 = vmatpush1.bf16.msra.mxu0 0
    %1001 = vmatprep.subr.bf16.mxu0 0
    %1002 = vmatpush1.bf16.msra.mxu0 0
    %1003 = vmatprep.subr.bf16.mxu0 0
    %1004 = vmatpush1.bf16.msra.mxu0 0
    %1005 = vmatprep.subr.bf16.mxu0 0
    %1006 = vmatpush1.bf16.msra.mxu0 0
    %1007 = vmatprep.subr.bf16.mxu0 0
    %1008 = vmatpush1.bf16.msra.mxu0 0
    %1009 = vmatprep.subr.bf16.mxu0 0
    %1010 = vmatpush1.bf16.msra.mxu0 0
    %1011 = vmatprep.subr.bf16.mxu0 0
    %1012 = vmatpush1.bf16.msra.mxu0 0
    %1013 = vmatprep.subr.bf16.mxu0 0
    %1014 = vmatpush1.bf16.msra.mxu0 0
    %1015 = vmatprep.subr.bf16.mxu0 0
    %1016 = vmatpush1.bf16.msra.mxu0 0
    %1017 = vmatprep.mubr.bf16.mxu0 0
    %1018 = vmatmul.mubr.bf16.gmra.mrb[0].mxu0 %v980
    %v1019 = vpop.f32.mrb[0].mxu0
    %v1020 = vadd.f32 0.0, %v1019
    %v1021 = vpop.f32.mrb[0].mxu0
    %v1022 = vpop.f32.mrb[0].mxu0
    %v1023 = vpop.f32.mrb[0].mxu0
    %1024 = vdwg.mxu0
    %v1026 = vsel %vm397, %v881, 0
    %v1029 = vsel %vm889, %v392, 0
    %1031 = vmatprep.subr.bf16.mxu0 0
    %1032 = vmatpush1.bf16.msra.mxu0 %v1029
    %1033 = vmatprep.subr.bf16.mxu0 0
    %1034 = vmatpush1.bf16.msra.mxu0 0
    %1035 = vmatprep.subr.bf16.mxu0 0
    %1036 = vmatpush1.bf16.msra.mxu0 0
    %1037 = vmatprep.subr.bf16.mxu0 0
    %1038 = vmatpush1.bf16.msra.mxu0 0
    %1039 = vmatprep.subr.bf16.mxu0 0
    %1040 = vmatpush1.bf16.msra.mxu0 0
    %1041 = vmatprep.subr.bf16.mxu0 0
    %1042 = vmatpush1.bf16.msra.mxu0 0
    %1043 = vmatprep.subr.bf16.mxu0 0
    %1044 = vmatpush1.bf16.msra.mxu0 0
    %1045 = vmatprep.subr.bf16.mxu0 0
    %1046 = vmatpush1.bf16.msra.mxu0 0
    %1047 = vmatprep.subr.bf16.mxu0 0
    %1048 = vmatpush1.bf16.msra.mxu0 0
    %1049 = vmatprep.subr.bf16.mxu0 0
    %1050 = vmatpush1.bf16.msra.mxu0 0
    %1051 = vmatprep.subr.bf16.mxu0 0
    %1052 = vmatpush1.bf16.msra.mxu0 0
    %1053 = vmatprep.subr.bf16.mxu0 0
    %1054 = vmatpush1.bf16.msra.mxu0 0
    %1055 = vmatprep.subr.bf16.mxu0 0
    %1056 = vmatpush1.bf16.msra.mxu0 0
    %1057 = vmatprep.subr.bf16.mxu0 0
    %1058 = vmatpush1.bf16.msra.mxu0 0
    %1059 = vmatprep.subr.bf16.mxu0 0
    %1060 = vmatpush1.bf16.msra.mxu0 0
    %1061 = vmatprep.subr.bf16.mxu0 0
    %1062 = vmatpush1.bf16.msra.mxu0 0
    %1063 = vmatprep.mubr.bf16.mxu0 0
    %1064 = vmatmul.mubr.bf16.gmra.mrb[0].mxu0 %v1026
    %v1065 = vpop.f32.mrb[0].mxu0
    %v1066 = vadd.f32 0.0, %v1065
    %v1067 = vpop.f32.mrb[0].mxu0
    %v1068 = vpop.f32.mrb[0].mxu0
    %v1069 = vpop.f32.mrb[0].mxu0
    %1070 = vdwg.mxu0
    %v1072 = vsel %vm397, %v882, 0
    %v1075 = vsel %vm889, %v393, 0
    %1077 = vmatprep.subr.bf16.mxu0 0
    %1078 = vmatpush1.bf16.msra.mxu0 %v1075
    %1079 = vmatprep.subr.bf16.mxu0 0
    %1080 = vmatpush1.bf16.msra.mxu0 0
    %1081 = vmatprep.subr.bf16.mxu0 0
    %1082 = vmatpush1.bf16.msra.mxu0 0
    %1083 = vmatprep.subr.bf16.mxu0 0
    %1084 = vmatpush1.bf16.msra.mxu0 0
    %1085 = vmatprep.subr.bf16.mxu0 0
    %1086 = vmatpush1.bf16.msra.mxu0 0
    %1087 = vmatprep.subr.bf16.mxu0 0
    %1088 = vmatpush1.bf16.msra.mxu0 0
    %1089 = vmatprep.subr.bf16.mxu0 0
    %1090 = vmatpush1.bf16.msra.mxu0 0
    %1091 = vmatprep.subr.bf16.mxu0 0
    %1092 = vmatpush1.bf16.msra.mxu0 0
    %1093 = vmatprep.subr.bf16.mxu0 0
    %1094 = vmatpush1.bf16.msra.mxu0 0
    %1095 = vmatprep.subr.bf16.mxu0 0
    %1096 = vmatpush1.bf16.msra.mxu0 0
    %1097 = vmatprep.subr.bf16.mxu0 0
    %1098 = vmatpush1.bf16.msra.mxu0 0
    %1099 = vmatprep.subr.bf16.mxu0 0
    %1100 = vmatpush1.bf16.msra.mxu0 0
    %1101 = vmatprep.subr.bf16.mxu0 0
    %1102 = vmatpush1.bf16.msra.mxu0 0
    %1103 = vmatprep.subr.bf16.mxu0 0
    %1104 = vmatpush1.bf16.msra.mxu0 0
    %1105 = vmatprep.subr.bf16.mxu0 0
    %1106 = vmatpush1.bf16.msra.mxu0 0
    %1107 = vmatprep.subr.bf16.mxu0 0
    %1108 = vmatpush1.bf16.msra.mxu0 0
    %1109 = vmatprep.mubr.bf16.mxu0 0
    %1110 = vmatmul.mubr.bf16.gmra.mrb[0].mxu0 %v1072
    %v1111 = vpop.f32.mrb[0].mxu0
    %v1112 = vadd.f32 0.0, %v1111
    %v1113 = vpop.f32.mrb[0].mxu0
    %v1114 = vpop.f32.mrb[0].mxu0
    %v1115 = vpop.f32.mrb[0].mxu0
    %1116 = vdwg.mxu0
    %v1118 = vsel %vm397, %v883, 0
    %v1121 = vsel %vm889, %v394, 0
    %1123 = vmatprep.subr.bf16.mxu0 0
    %1124 = vmatpush1.bf16.msra.mxu0 %v1121
    %1125 = vmatprep.subr.bf16.mxu0 0
    %1126 = vmatpush1.bf16.msra.mxu0 0
    %1127 = vmatprep.subr.bf16.mxu0 0
    %1128 = vmatpush1.bf16.msra.mxu0 0
    %1129 = vmatprep.subr.bf16.mxu0 0
    %1130 = vmatpush1.bf16.msra.mxu0 0
    %1131 = vmatprep.subr.bf16.mxu0 0
    %1132 = vmatpush1.bf16.msra.mxu0 0
    %1133 = vmatprep.subr.bf16.mxu0 0
    %1134 = vmatpush1.bf16.msra.mxu0 0
    %1135 = vmatprep.subr.bf16.mxu0 0
    %1136 = vmatpush1.bf16.msra.mxu0 0
    %1137 = vmatprep.subr.bf16.mxu0 0
    %1138 = vmatpush1.bf16.msra.mxu0 0
    %1139 = vmatprep.subr.bf16.mxu0 0
    %1140 = vmatpush1.bf16.msra.mxu0 0
    %1141 = vmatprep.subr.bf16.mxu0 0
    %1142 = vmatpush1.bf16.msra.mxu0 0
    %1143 = vmatprep.subr.bf16.mxu0 0
    %1144 = vmatpush1.bf16.msra.mxu0 0
    %1145 = vmatprep.subr.bf16.mxu0 0
    %1146 = vmatpush1.bf16.msra.mxu0 0
    %1147 = vmatprep.subr.bf16.mxu0 0
    %1148 = vmatpush1.bf16.msra.mxu0 0
    %1149 = vmatprep.subr.bf16.mxu0 0
    %1150 = vmatpush1.bf16.msra.mxu0 0
    %1151 = vmatprep.subr.bf16.mxu0 0
    %1152 = vmatpush1.bf16.msra.mxu0 0
    %1153 = vmatprep.subr.bf16.mxu0 0
    %1154 = vmatpush1.bf16.msra.mxu0 0
    %1155 = vmatprep.mubr.bf16.mxu0 0
    %1156 = vmatmul.mubr.bf16.gmra.mrb[0].mxu0 %v1118
    %v1157 = vpop.f32.mrb[0].mxu0
    %v1158 = vadd.f32 0.0, %v1157
    %v1159 = vpop.f32.mrb[0].mxu0
    %v1160 = vpop.f32.mrb[0].mxu0
    %v1161 = vpop.f32.mrb[0].mxu0
    %1162 = vdwg.mxu0
    %v1164 = vsel %vm397, %v884, 0
    %v1167 = vsel %vm889, %v395, 0
    %1169 = vmatprep.subr.bf16.mxu0 0
    %1170 = vmatpush1.bf16.msra.mxu0 %v1167
    %1171 = vmatprep.subr.bf16.mxu0 0
    %1172 = vmatpush1.bf16.msra.mxu0 0
    %1173 = vmatprep.subr.bf16.mxu0 0
    %1174 = vmatpush1.bf16.msra.mxu0 0
    %1175 = vmatprep.subr.bf16.mxu0 0
    %1176 = vmatpush1.bf16.msra.mxu0 0
    %1177 = vmatprep.subr.bf16.mxu0 0
    %1178 = vmatpush1.bf16.msra.mxu0 0
    %1179 = vmatprep.subr.bf16.mxu0 0
    %1180 = vmatpush1.bf16.msra.mxu0 0
    %1181 = vmatprep.subr.bf16.mxu0 0
    %1182 = vmatpush1.bf16.msra.mxu0 0
    %1183 = vmatprep.subr.bf16.mxu0 0
    %1184 = vmatpush1.bf16.msra.mxu0 0
    %1185 = vmatprep.subr.bf16.mxu0 0
    %1186 = vmatpush1.bf16.msra.mxu0 0
    %1187 = vmatprep.subr.bf16.mxu0 0
    %1188 = vmatpush1.bf16.msra.mxu0 0
    %1189 = vmatprep.subr.bf16.mxu0 0
    %1190 = vmatpush1.bf16.msra.mxu0 0
    %1191 = vmatprep.subr.bf16.mxu0 0
    %1192 = vmatpush1.bf16.msra.mxu0 0
    %1193 = vmatprep.subr.bf16.mxu0 0
    %1194 = vmatpush1.bf16.msra.mxu0 0
    %1195 = vmatprep.subr.bf16.mxu0 0
    %1196 = vmatpush1.bf16.msra.mxu0 0
    %1197 = vmatprep.subr.bf16.mxu0 0
    %1198 = vmatpush1.bf16.msra.mxu0 0
    %1199 = vmatprep.subr.bf16.mxu0 0
    %1200 = vmatpush1.bf16.msra.mxu0 0
    %1201 = vmatprep.mubr.bf16.mxu0 0
    %1202 = vmatmul.mubr.bf16.gmra.mrb[0].mxu0 %v1164
    %v1203 = vpop.f32.mrb[0].mxu0
    %v1204 = vadd.f32 0.0, %v1203
    %v1205 = vpop.f32.mrb[0].mxu0
    %v1206 = vpop.f32.mrb[0].mxu0
    %v1207 = vpop.f32.mrb[0].mxu0
    %1208 = vdwg.mxu0
    %v1210 = vsel %vm397, %v885, 0
    %v1213 = vsel %vm889, %v396, 0
    %1215 = vmatprep.subr.bf16.mxu0 0
    %1216 = vmatpush1.bf16.msra.mxu0 %v1213
    %1217 = vmatprep.subr.bf16.mxu0 0
    %1218 = vmatpush1.bf16.msra.mxu0 0
    %1219 = vmatprep.subr.bf16.mxu0 0
    %1220 = vmatpush1.bf16.msra.mxu0 0
    %1221 = vmatprep.subr.bf16.mxu0 0
    %1222 = vmatpush1.bf16.msra.mxu0 0
    %1223 = vmatprep.subr.bf16.mxu0 0
    %1224 = vmatpush1.bf16.msra.mxu0 0
    %1225 = vmatprep.subr.bf16.mxu0 0
    %1226 = vmatpush1.bf16.msra.mxu0 0
    %1227 = vmatprep.subr.bf16.mxu0 0
    %1228 = vmatpush1.bf16.msra.mxu0 0
    %1229 = vmatprep.subr.bf16.mxu0 0
    %1230 = vmatpush1.bf16.msra.mxu0 0
    %1231 = vmatprep.subr.bf16.mxu0 0
    %1232 = vmatpush1.bf16.msra.mxu0 0
    %1233 = vmatprep.subr.bf16.mxu0 0
    %1234 = vmatpush1.bf16.msra.mxu0 0
    %1235 = vmatprep.subr.bf16.mxu0 0
    %1236 = vmatpush1.bf16.msra.mxu0 0
    %1237 = vmatprep.subr.bf16.mxu0 0
    %1238 = vmatpush1.bf16.msra.mxu0 0
    %1239 = vmatprep.subr.bf16.mxu0 0
    %1240 = vmatpush1.bf16.msra.mxu0 0
    %1241 = vmatprep.subr.bf16.mxu0 0
    %1242 = vmatpush1.bf16.msra.mxu0 0
    %1243 = vmatprep.subr.bf16.mxu0 0
    %1244 = vmatpush1.bf16.msra.mxu0 0
    %1245 = vmatprep.subr.bf16.mxu0 0
    %1246 = vmatpush1.bf16.msra.mxu0 0
    %1247 = vmatprep.mubr.bf16.mxu0 0
    %1248 = vmatmul.mubr.bf16.gmra.mrb[0].mxu0 %v1210
    %v1249 = vpop.f32.mrb[0].mxu0
    %v1250 = vadd.f32 0.0, %v1249
    %v1251 = vpop.f32.mrb[0].mxu0
    %v1252 = vpop.f32.mrb[0].mxu0
    %v1253 = vpop.f32.mrb[0].mxu0
    %1254 = vdwg.mxu0
    %1256 = vrot.lane.b32.xlu0 %v974, 8
    %v1257 = vpop.permute.xlu0 %1256
    %1260 = vrot.lane.b32.xlu0 %v1020, 16
    %v1261 = vpop.permute.xlu0 %1260
    %1264 = vrot.lane.b32.xlu0 %v1066, 24
    %v1265 = vpop.permute.xlu0 %1264
    %v1267 = vsel %vm397, %v928, %v1257
    %vm1268 = vcmask 130048
    %v1269 = vsel %vm1268, %v1267, %v1261
    %vm1270 = vcmask 195584
    %v1271 = vsel %vm1270, %v1269, %v1265
    %1273 = vrot.lane.b32.xlu0 %v1158, 8
    %v1274 = vpop.permute.xlu0 %1273
    %1277 = vrot.lane.b32.xlu0 %v1204, 16
    %v1278 = vpop.permute.xlu0 %1277
    %1281 = vrot.lane.b32.xlu0 %v1250, 24
    %v1282 = vpop.permute.xlu0 %1281
    %v1284 = vsel %vm397, %v1112, %v1274
    %v1285 = vsel %vm1268, %v1284, %v1278
    %v1286 = vsel %vm1270, %v1285, %v1282
    %v1287 = vpack.c.bf16 %v1286, %v1271
    %v1288 = vld [vmem:[%s5] sm:$0xf]
    %v1289 = vld [vmem:[%s5 + $0x4] sm:$0xf]
    %v1290 = vld [vmem:[%s5 + $0x8] sm:$0xf]
    %v1291 = vld [vmem:[%s5 + $0xc] sm:$0xf]
    %v1292 = vld [vmem:[%s6] sm:$0x1]
    %v1294 = vlaneseq
    %v1295 = vshrl.u32 %v1294, 7
    %v1296 = vsub.s32 0, %v1295
    %v1297 = vrot.slane %v1292, %v1296
    %v1303 = vunpack.c.l.b16 %v1288
    %v1304 = vunpack.c.l.b16 %v1289
    %v1305 = vunpack.c.l.b16 %v1290
    %v1306 = vunpack.c.l.b16 %v1291
    %v1307 = vpack.c.b16 %v1304, %v1303
    %v1308 = vpack.c.b16 %v1306, %v1305
    %v1312 = vsel %vm122, %v1287, 0
    %1314 = vmatprep.subr.bf16.mxu0 0
    %1315 = vmatpush1.bf16.msra.mxu0 %v1307
    %1316 = vmatprep.subr.bf16.mxu0 0
    %1317 = vmatpush1.bf16.msra.mxu0 %v1308
    %1318 = vmatprep.subr.bf16.mxu0 0
    %1319 = vmatpush1.bf16.msra.mxu0 0
    %1320 = vmatprep.subr.bf16.mxu0 0
    %1321 = vmatpush1.bf16.msra.mxu0 0
    %1322 = vmatprep.subr.bf16.mxu0 0
    %1323 = vmatpush1.bf16.msra.mxu0 0
    %1324 = vmatprep.subr.bf16.mxu0 0
    %1325 = vmatpush1.bf16.msra.mxu0 0
    %1326 = vmatprep.subr.bf16.mxu0 0
    %1327 = vmatpush1.bf16.msra.mxu0 0
    %1328 = vmatprep.subr.bf16.mxu0 0
    %1329 = vmatpush1.bf16.msra.mxu0 0
    %1330 = vmatprep.subr.bf16.mxu0 0
    %1331 = vmatpush1.bf16.msra.mxu0 0
    %1332 = vmatprep.subr.bf16.mxu0 0
    %1333 = vmatpush1.bf16.msra.mxu0 0
    %1334 = vmatprep.subr.bf16.mxu0 0
    %1335 = vmatpush1.bf16.msra.mxu0 0
    %1336 = vmatprep.subr.bf16.mxu0 0
    %1337 = vmatpush1.bf16.msra.mxu0 0
    %1338 = vmatprep.subr.bf16.mxu0 0
    %1339 = vmatpush1.bf16.msra.mxu0 0
    %1340 = vmatprep.subr.bf16.mxu0 0
    %1341 = vmatpush1.bf16.msra.mxu0 0
    %1342 = vmatprep.subr.bf16.mxu0 0
    %1343 = vmatpush1.bf16.msra.mxu0 0
    %1344 = vmatprep.subr.bf16.mxu0 0
    %1345 = vmatpush1.bf16.msra.mxu0 0
    %1346 = vmatprep.mubr.bf16.mxu0 0
    %1347 = vmatmul.mubr.bf16.gmra.mrb[0].mxu0 %v1312
    %v1348 = vpop.f32.mrb[0].mxu0
    %v1349 = vadd.f32 %v1297, %v1348
    %v1350 = vpop.f32.mrb[0].mxu0
    %v1351 = vpop.f32.mrb[0].mxu0
    %v1352 = vadd.f32 %v1297, %v1351
    %v1353 = vpop.f32.mrb[0].mxu0
    %1354 = vdwg.mxu0
    %1355 = vst.msk [vmem:[#allocation11] sm:$0xff] %vm122, %v1349
    %1356 = vst.msk [vmem:[#allocation11 + $0x8] sm:$0xff] %vm122, %v1352
    // Predicated region
    $region50: #{tpu_custom_call.1} parent=1 // pred_check
      _
    $region51: #{tpu_custom_call.1} parent=1 // pred_check_branch
      %1358 = sbr.rel (0) target = $region53
    $region52: #{tpu_custom_call.1} parent=1 // pred_region
      %s1360 = ssub.s32 256, 256
      %1361 = vsyncadd [#allocation4], %s1360
      %s1362 = sshll.u32 [#allocation11], 4
      %s1363 = int_to_ptr.vmem [resolvable:$true] %s1362
      %1368 = dma.vmem_to_hbm [thread:$0]  %s1363, 256, %s7, [#allocation4], 128, 128, 8
    $region53: #{tpu_custom_call.1} parent=1 // pred_fallthru
      _
    // Predicated region
    $region54: #{tpu_custom_call.1} parent=1 // pred_check
      _
    $region55: #{tpu_custom_call.1} parent=1 // pred_check_branch
      %1370 = sbr.rel (0) target = $region57
    $region56: #{tpu_custom_call.1} parent=1 // pred_region
      %1371 = dma.done [#allocation4], 256
    $region57: #{tpu_custom_call.1} parent=1 // pred_fallthru
      _
    %1372 = vsyncpa [#allocation3], 1
    %1373 = vsyncpa [#allocation6], 1
    %1374 = vsyncpa [#allocation9], 1
    %1375 = vsyncpa [#allocation4], 1

</llo_original>
